<compile_context>
chip_gen: v7x
topology: tpu7x:2x2x1
jax: 0.10.0
libtpu: 0.0.40
codegen_flags: <defaults>
</compile_context>

<pallas_src>
import functools

import jax
import jax.numpy as jnp
import numpy as np
from jax import lax
from jax.experimental import pallas as pl
from jax.experimental.pallas import tpu as pltpu


# ----------------------------------------------------------------------------- kernel


def _attention_kernel(x_ref, w_qkv_ref, b_qkv_ref, w_proj_ref, b_proj_ref,
                      o_ref, acc_ref, *, n_group_heads, scale):
    """Grid step = (batch block i, head group g). c_proj partial sums accumulate across g."""
    g = pl.program_id(1)
    n_groups = pl.num_programs(1)

    BB, T, NX = x_ref.shape
    GH = n_group_heads
    GD3 = w_qkv_ref.shape[1]          # 3 * GD
    GD = GD3 // 3
    D = GD // GH
    rows = BB * T
    cdt = x_ref.dtype                 # MXU operand dtype (bf16-friendly; f32 acc via preferred_element_type)

    @pl.when(g == 0)
    def _():
        acc_ref[...] = jnp.zeros_like(acc_ref)

    x = x_ref[...].reshape(rows, NX)

    # Group QKV projection: full-NX contraction depth, lane-aligned 3*GD output, f32 accumulation.
    qkv = jnp.dot(x, w_qkv_ref[...], preferred_element_type=jnp.float32)
    qkv = qkv + b_qkv_ref[...].astype(jnp.float32)

    # Additive causal mask, built once per grid step (only an f32 add touches the scores).
    row_i = lax.broadcasted_iota(jnp.int32, (T, T), 0)
    col_i = lax.broadcasted_iota(jnp.int32, (T, T), 1)
    mask_add = jnp.where(col_i <= row_i, jnp.float32(0.0), jnp.float32(-10000.0))  # (T, T)

    inv_sqrt_d = jnp.float32(1.0 / float(D) ** 0.5)

    # Per-head attention within the group. GH is 1-4, so this static unroll stays tiny and
    # vreg live ranges are bounded by construction (big head counts live on the grid axis).
    ctx_parts = []
    for h in range(GH):
        qh = qkv[:, 0 * GD + h * D:0 * GD + (h + 1) * D]
        kh = qkv[:, 1 * GD + h * D:1 * GD + (h + 1) * D]
        vh = qkv[:, 2 * GD + h * D:2 * GD + (h + 1) * D]
        if scale:
            qh = qh * inv_sqrt_d      # f32; mathematically == post-matmul w / sqrt(D)

        q3 = qh.reshape(BB, T, D).astype(cdt)
        k3 = kh.reshape(BB, T, D).astype(cdt)
        v3 = vh.reshape(BB, T, D).astype(cdt)

        # batched 'NT' contraction (no in-kernel transpose), f32 accumulation on the MXU.
        s = jnp.einsum("bqd,bkd->bqk", q3, k3, preferred_element_type=jnp.float32)
        s = s + mask_add              # additive causal mask

        # manual softmax: exp on the EUP, approximate reciprocal instead of a VALU divide.
        # NOTE: approx reciprocal is inference-quality; switch approx=False for training logits.
        m = jnp.max(s, axis=-1, keepdims=True)
        e = jnp.exp(s - m)
        p = e * pl.reciprocal(jnp.sum(e, axis=-1, keepdims=True), approx=True)
        # TODO(synk): attn_dropout is identity in eval mode.

        ctx = jnp.einsum("bqk,bkd->bqd", p.astype(cdt), v3,
                         preferred_element_type=jnp.float32)           # (BB, T, D) f32
        ctx_parts.append(ctx.reshape(rows, D))

    # Pack the group's heads into one lane-contiguous (rows, GD) slab and fold it into c_proj
    # with a single matmul at contraction depth GD (full MXU depth at real GPT-2 widths).
    group_ctx = ctx_parts[0] if GH == 1 else jnp.concatenate(ctx_parts, axis=-1)
    acc_ref[...] += jnp.dot(group_ctx.astype(cdt), w_proj_ref[...],
                            preferred_element_type=jnp.float32)

    @pl.when(g == n_groups - 1)
    def _():
        out = acc_ref[...] + b_proj_ref[...].astype(jnp.float32)
        # TODO(synk): resid_dropout is identity in eval mode.
        o_ref[...] = out.reshape(BB, T, NX).astype(o_ref.dtype)


# ----------------------------------------------------------------------------- planning helpers


def _chip_profile():
    """Best-effort generation detection: physical VMEM and TensorCores-per-chip heuristics."""
    kind = ""
    try:
        kind = jax.devices()[0].device_kind.lower()
    except Exception:
        pass
    vmem_phys = 128 << 20
    try:
        vmem_phys = int(pltpu.get_tpu_info().vmem_capacity_bytes)
    except Exception:
        if "v7" in kind:
            vmem_phys = 64 << 20
    is_v5e = ("v5e" in kind) or ("v5 lite" in kind) or ("v5litepod" in kind)
    two_tc = ("v7" in kind) or (vmem_phys <= (64 << 20))   # v7x: 2 TCs, 64 MiB VMEM per TC
    return {"vmem_phys": vmem_phys, "is_v5e": is_v5e, "two_tc": two_tc}


def _pick_group_heads(n_head, head_dim, prefer_gd):
    """Heads per group: largest divisor of n_head whose width (gh*D) is 128-aligned and <= the
    preferred group width (128 on v5e, 256 on v6e/v7x). Falls back to a single group (no
    alignment constraint) for small / odd models."""
    divs = [d for d in range(1, n_head + 1) if n_head % d == 0]
    for cap in (prefer_gd, 2 * prefer_gd):
        aligned = [d for d in divs if d < n_head and (d * head_dim) % 128 == 0
                   and d * head_dim <= cap]
        if aligned:
            return max(aligned)
    return n_head                                            # single group covering all heads


def _vmem_estimate_bytes(bb, T, NX, gh, D, itemsize):
    """Honest per-step VMEM estimate: double-buffered activation/weight blocks (actual dtype)
    plus the f32 intermediates (qkv slab, ~2 live score-sized temps, ctx slab) and the f32
    c_proj accumulator scratch."""
    rows = bb * T
    gd = gh * D
    io = 2 * 2 * rows * NX * itemsize                                   # x in + out, double-buffered
    wts = 2 * (NX * 3 * gd + 3 * gd + gd * NX + NX) * itemsize          # group weight/bias blocks
    interm = (rows * 3 * gd + 2 * bb * gh * T * T + rows * gd) * 4      # qkv / scores / ctx (f32)
    acc = rows * NX * 4                                                 # accumulator scratch
    return io + wts + interm + acc


def _pick_block_b_and_vmem(B, T, NX, gh, D, dtype, prof):
    itemsize = jnp.dtype(dtype).itemsize
    if prof["two_tc"]:
        cap = 56 << 20                                       # v7x: 64 MiB physical, leave headroom
    else:
        cap = min(100 << 20, int(0.8 * prof["vmem_phys"]))   # v5e/v6e: 128 MiB physical

    row_cap = 512                                            # amortize ~0.35us/step, fill MXU M
    divisors = [d for d in range(1, B + 1) if B % d == 0]
    cands = [d for d in divisors if d * T <= row_cap] or [1]
    fitting = [d for d in cands
               if _vmem_estimate_bytes(d, T, NX, gh, D, itemsize) <= cap] or [min(cands)]
    bb = max(fitting)

    if prof["two_tc"] and B // bb < 2 and B >= 2:
        # v7x: the 2 TensorCores are only fed from separate parallel grid steps.
        smaller = [d for d in fitting if B // d >= 2]
        if smaller:
            bb = max(smaller)

    est = _vmem_estimate_bytes(bb, T, NX, gh, D, itemsize)
    vmem_limit = int(min(cap, max(32 << 20, int(1.5 * est))))
    return bb, vmem_limit


# ----------------------------------------------------------------------------- wrapper


def attention_forward(hidden_states, w_qkv, b_qkv, w_proj, b_proj, *, n_head, scale=False):
    B, T, NX = hidden_states.shape
    assert NX % n_head == 0
    D = NX // n_head
    cdt = hidden_states.dtype

    prof = _chip_profile()
    gh = _pick_group_heads(n_head, D, prefer_gd=128 if prof["is_v5e"] else 256)
    ng = n_head // gh
    gd = gh * D

    # Cast weights/biases to the compute dtype (halves weight VMEM + DMA when activations are bf16).
    w_qkv = w_qkv.astype(cdt)
    b_qkv = b_qkv.astype(cdt)
    w_proj = w_proj.astype(cdt)
    b_proj = b_proj.astype(cdt)

    # Re-order c_attn columns head-group-major so group g's block is [q_g | k_g | v_g]
    # (lane-contiguous, width 3*gd). c_proj rows are already head-major, so its group block is
    # simply rows [g*gd : (g+1)*gd].
    w_qkv_r = w_qkv.reshape(NX, 3, ng, gd).transpose(0, 2, 1, 3).reshape(NX, ng * 3 * gd)
    b_qkv_r = b_qkv.reshape(3, ng, gd).transpose(1, 0, 2).reshape(1, ng * 3 * gd)
    b_proj_r = b_proj.reshape(1, NX)

    block_b, vmem_limit = _pick_block_b_and_vmem(B, T, NX, gh, D, cdt, prof)
    grid = (B // block_b, ng)

    kernel = functools.partial(_attention_kernel, n_group_heads=gh, scale=scale)
    call = pl.pallas_call(
        kernel,
        out_shape=jax.ShapeDtypeStruct((B, T, NX), cdt),
        grid=grid,
        in_specs=[
            pl.BlockSpec((block_b, T, NX), lambda i, g: (i, 0, 0)),     # hidden_states (same across g)
            pl.BlockSpec((NX, 3 * gd), lambda i, g: (0, g)),            # c_attn weight, group block
            pl.BlockSpec((1, 3 * gd), lambda i, g: (0, g)),             # c_attn bias, group block
            pl.BlockSpec((gd, NX), lambda i, g: (g, 0)),                # c_proj weight, group rows
            pl.BlockSpec((1, NX), lambda i, g: (0, 0)),                 # c_proj bias
        ],
        # Output last dim spans the full feature dim; at real GPT-2 widths it is a multiple of
        # 128 -> lane-dense (unmasked) stores. Written only on the last group step.
        out_specs=pl.BlockSpec((block_b, T, NX), lambda i, g: (i, 0, 0)),
        scratch_shapes=[pltpu.VMEM((block_b * T, NX), jnp.float32)],    # c_proj f32 accumulator
        compiler_params=pltpu.CompilerParams(
            dimension_semantics=("parallel", "arbitrary"),
            vmem_limit_bytes=vmem_limit,
        ),
    )
    return call(hidden_states, w_qkv_r, b_qkv_r, w_proj, b_proj_r)


# ----------------------------------------------------------------------------- reference + test


def attention_reference(x, w_qkv, b_qkv, w_proj, b_proj, *, n_head, scale):
    """Pure-JAX mirror of the PyTorch forward (self-attention path, eval mode)."""
    B, T, NX = x.shape
    D = NX // n_head
    qkv = x @ w_qkv + b_qkv
    q, k, v = jnp.split(qkv, 3, axis=-1)
    split = lambda t: t.reshape(B, T, n_head, D).transpose(0, 2, 1, 3)   # (B, H, T, D)
    q, k, v = split(q), split(k), split(v)
    w = jnp.einsum("bhqd,bhkd->bhqk", q, k)
    if scale:
        w = w / float(D) ** 0.5
    mask = jnp.tril(jnp.ones((T, T), dtype=bool))
    w = jnp.where(mask[None, None], w, jnp.float32(-10000.0))
    w = jax.nn.softmax(w, axis=-1)
    a = jnp.einsum("bhqk,bhkd->bhqd", w, v)
    a = a.transpose(0, 2, 1, 3).reshape(B, T, NX)
    return a @ w_proj + b_proj


if __name__ == "__main__":
    # Small shapes implied by the module: n_ctx = seq = 8, nx = n_state = 32, n_head = 4.
    B, T, NX, H = 2, 8, 32, 4
    SCALE = True

    key = jax.random.PRNGKey(0)
    kx, kw1, kb1, kw2, kb2 = jax.random.split(key, 5)

    x = jax.random.normal(kx, (B, T, NX), dtype=jnp.float32)
    # HF Conv1D init: weight ~ N(0, 0.02); small deterministic biases to exercise the bias path.
    w_qkv = 0.02 * jax.random.normal(kw1, (NX, 3 * NX), dtype=jnp.float32)
    b_qkv = 0.01 * jax.random.normal(kb1, (3 * NX,), dtype=jnp.float32)
    w_proj = 0.02 * jax.random.normal(kw2, (NX, NX), dtype=jnp.float32)
    b_proj = 0.01 * jax.random.normal(kb2, (NX,), dtype=jnp.float32)

    out = attention_forward(x, w_qkv, b_qkv, w_proj, b_proj, n_head=H, scale=SCALE)
    out = jax.block_until_ready(out)

    ref = attention_reference(x, w_qkv, b_qkv, w_proj, b_proj, n_head=H, scale=SCALE)
    # Tolerance relaxed vs. exact-divide softmax: the kernel uses the EUP approximate
    # reciprocal (pl.reciprocal(..., approx=True)) for the softmax denominator.
    np.testing.assert_allclose(np.asarray(out), np.asarray(ref), rtol=2e-3, atol=1e-4)

    print("KERNEL_OK")
</pallas_src>

<mosaic_0001>
module attributes {stable_mosaic.version = 11 : i64} {
  func.func @_attention_kernel(%arg0: i32, %arg1: i32, %arg2: memref<2x8x32xf32, #tpu.memory_space<vmem>>, %arg3: memref<32x96xf32, #tpu.memory_space<vmem>>, %arg4: memref<1x96xf32, #tpu.memory_space<vmem>>, %arg5: memref<32x32xf32, #tpu.memory_space<vmem>>, %arg6: memref<1x32xf32, #tpu.memory_space<vmem>>, %arg7: memref<2x8x32xf32, #tpu.memory_space<vmem>>, %arg8: memref<16x32xf32, #tpu.memory_space<vmem>>) attributes {dimension_semantics = [#tpu.dimension_semantics<parallel>, #tpu.dimension_semantics<arbitrary>], iteration_bounds = array<i64: 1, 1>, scalar_prefetch = 0 : i64, scratch_operands = 1 : i64, tpu.core_type = #tpu.core_type<tc>, window_params = [{transform_indices = @transform_0, window_bounds = array<i64: 2, 8, 32>}, {transform_indices = @transform_1, window_bounds = array<i64: 32, 96>}, {transform_indices = @transform_2, window_bounds = array<i64: 1, 96>}, {transform_indices = @transform_3, window_bounds = array<i64: 32, 32>}, {pipeline_mode = #tpu.pipeline_mode<synchronous>, transform_indices = @transform_4, window_bounds = array<i64: 1, 32>}, {transform_indices = @transform_5, window_bounds = array<i64: 2, 8, 32>}]} {
    %c0_i32 = arith.constant 0 : i32
    %0 = arith.cmpi eq, %arg1, %c0_i32 : i32
    %1 = arith.extui %0 : i1 to i32
    %c0_i32_0 = arith.constant 0 : i32
    %2 = arith.cmpi ne, %1, %c0_i32_0 : i32
    scf.if %2 {
      %cst_38 = arith.constant 0.000000e+00 : f32
      %121 = vector.broadcast %cst_38 : f32 to vector<16x32xf32>
      %c0_39 = arith.constant 0 : index
      %c0_40 = arith.constant 0 : index
      %122 = vector.load %arg8[%c0_39, %c0_40] : memref<16x32xf32, #tpu.memory_space<vmem>>, vector<16x32xf32>
      tpu.vector_store %arg8[%c0_39, %c0_40], %121 {strides = array<i32>} : memref<16x32xf32, #tpu.memory_space<vmem>>, vector<16x32xf32>,
    } else {
    }
    %c0 = arith.constant 0 : index
    %c0_1 = arith.constant 0 : index
    %c0_2 = arith.constant 0 : index
    %3 = vector.load %arg2[%c0, %c0_1, %c0_2] : memref<2x8x32xf32, #tpu.memory_space<vmem>>, vector<2x8x32xf32>
    %4 = vector.shape_cast %3 : vector<2x8x32xf32> to vector<16x32xf32>
    %c0_3 = arith.constant 0 : index
    %c0_4 = arith.constant 0 : index
    %5 = vector.load %arg3[%c0_3, %c0_4] : memref<32x96xf32, #tpu.memory_space<vmem>>, vector<32x96xf32>
    %cst = arith.constant dense<0.000000e+00> : vector<16x96xf32>
    %6 = tpu.matmul %4, %5, %cst {dimension_numbers = #tpu.dot_dimension_numbers<[1], [0], [0], [1], [0, 0, 1, 1], [], []>} : vector<16x32xf32>, vector<32x96xf32>, vector<16x96xf32> -> vector<16x96xf32>
    %c0_5 = arith.constant 0 : index
    %c0_6 = arith.constant 0 : index
    %7 = vector.load %arg4[%c0_5, %c0_6] : memref<1x96xf32, #tpu.memory_space<vmem>>, vector<1x96xf32>
    %8 = vector.broadcast %7 : vector<1x96xf32> to vector<16x96xf32>
    %9 = arith.addf %6, %8 : vector<16x96xf32>
    %10 = tpu.iota {dimensions = array<i32: 0>} : vector<8x8xi32>
    %11 = tpu.iota {dimensions = array<i32: 1>} : vector<8x8xi32>
    %12 = arith.cmpi sle, %11, %10 : vector<8x8xi32>
    %cst_7 = arith.constant 0.000000e+00 : f32
    %cst_8 = arith.constant -1.000000e+04 : f32
    %13 = vector.broadcast %cst_7 : f32 to vector<8x8xf32>
    %14 = vector.broadcast %cst_8 : f32 to vector<8x8xf32>
    %15 = arith.select %12, %13, %14 : vector<8x8xi1>, vector<8x8xf32>
    %16 = vector.extract_strided_slice %9 {offsets = [0, 0], sizes = [16, 8], strides = [1, 1]} : vector<16x96xf32> to vector<16x8xf32>
    %17 = vector.extract_strided_slice %9 {offsets = [0, 32], sizes = [16, 8], strides = [1, 1]} : vector<16x96xf32> to vector<16x8xf32>
    %18 = vector.extract_strided_slice %9 {offsets = [0, 64], sizes = [16, 8], strides = [1, 1]} : vector<16x96xf32> to vector<16x8xf32>
    %cst_9 = arith.constant 0.353553385 : f32
    %19 = vector.broadcast %cst_9 : f32 to vector<16x8xf32>
    %20 = arith.mulf %16, %19 : vector<16x8xf32>
    %21 = vector.shape_cast %20 : vector<16x8xf32> to vector<2x8x8xf32>
    %22 = vector.shape_cast %17 : vector<16x8xf32> to vector<2x8x8xf32>
    %23 = vector.shape_cast %18 : vector<16x8xf32> to vector<2x8x8xf32>
    "tpu.trace_start"() <{level = 10 : i32, message = "bqd,bkd->bqk"}> : () -> ()
    %cst_10 = arith.constant dense<0.000000e+00> : vector<2x8x8xf32>
    %24 = tpu.matmul %21, %22, %cst_10 {dimension_numbers = #tpu.dot_dimension_numbers<[2], [2], [1], [1], [0, 0, 0, 1, 1, 1], [0], [0]>} : vector<2x8x8xf32>, vector<2x8x8xf32>, vector<2x8x8xf32> -> vector<2x8x8xf32>
    "tpu.trace_stop"() : () -> ()
    %25 = vector.shape_cast %15 : vector<8x8xf32> to vector<1x8x8xf32>
    %26 = vector.broadcast %25 : vector<1x8x8xf32> to vector<2x8x8xf32>
    %27 = arith.addf %24, %26 : vector<2x8x8xf32>
    %cst_11 = arith.constant dense<0xFF800000> : vector<2x8xf32>
    %28 = vector.multi_reduction <maximumf>, %27, %cst_11 [2] : vector<2x8x8xf32> to vector<2x8xf32>
    %29 = vector.shape_cast %28 : vector<2x8xf32> to vector<2x8x1xf32>
    %30 = vector.broadcast %29 : vector<2x8x1xf32> to vector<2x8x8xf32>
    %31 = arith.subf %27, %30 : vector<2x8x8xf32>
    %32 = math.exp %31 : vector<2x8x8xf32>
    %cst_12 = arith.constant dense<0.000000e+00> : vector<2x8xf32>
    %33 = vector.multi_reduction <add>, %32, %cst_12 [2] : vector<2x8x8xf32> to vector<2x8xf32>
    %34 = vector.shape_cast %33 : vector<2x8xf32> to vector<2x8x1xf32>
    %35 = tpu.reciprocal %34 {approx = true} : vector<2x8x1xf32> -> vector<2x8x1xf32>
    %36 = vector.broadcast %35 : vector<2x8x1xf32> to vector<2x8x8xf32>
    %37 = arith.mulf %32, %36 : vector<2x8x8xf32>
    "tpu.trace_start"() <{level = 10 : i32, message = "bqk,bkd->bqd"}> : () -> ()
    %cst_13 = arith.constant dense<0.000000e+00> : vector<2x8x8xf32>
    %38 = tpu.matmul %37, %23, %cst_13 {dimension_numbers = #tpu.dot_dimension_numbers<[2], [1], [1], [2], [0, 0, 0, 1, 1, 2], [0], [0]>} : vector<2x8x8xf32>, vector<2x8x8xf32>, vector<2x8x8xf32> -> vector<2x8x8xf32>
    "tpu.trace_stop"() : () -> ()
    %39 = vector.shape_cast %38 : vector<2x8x8xf32> to vector<16x8xf32>
    %40 = vector.extract_strided_slice %9 {offsets = [0, 8], sizes = [16, 8], strides = [1, 1]} : vector<16x96xf32> to vector<16x8xf32>
    %41 = vector.extract_strided_slice %9 {offsets = [0, 40], sizes = [16, 8], strides = [1, 1]} : vector<16x96xf32> to vector<16x8xf32>
    %42 = vector.extract_strided_slice %9 {offsets = [0, 72], sizes = [16, 8], strides = [1, 1]} : vector<16x96xf32> to vector<16x8xf32>
    %cst_14 = arith.constant 0.353553385 : f32
    %43 = vector.broadcast %cst_14 : f32 to vector<16x8xf32>
    %44 = arith.mulf %40, %43 : vector<16x8xf32>
    %45 = vector.shape_cast %44 : vector<16x8xf32> to vector<2x8x8xf32>
    %46 = vector.shape_cast %41 : vector<16x8xf32> to vector<2x8x8xf32>
    %47 = vector.shape_cast %42 : vector<16x8xf32> to vector<2x8x8xf32>
    "tpu.trace_start"() <{level = 10 : i32, message = "bqd,bkd->bqk"}> : () -> ()
    %cst_15 = arith.constant dense<0.000000e+00> : vector<2x8x8xf32>
    %48 = tpu.matmul %45, %46, %cst_15 {dimension_numbers = #tpu.dot_dimension_numbers<[2], [2], [1], [1], [0, 0, 0, 1, 1, 1], [0], [0]>} : vector<2x8x8xf32>, vector<2x8x8xf32>, vector<2x8x8xf32> -> vector<2x8x8xf32>
    "tpu.trace_stop"() : () -> ()
    %49 = vector.shape_cast %15 : vector<8x8xf32> to vector<1x8x8xf32>
    %50 = vector.broadcast %49 : vector<1x8x8xf32> to vector<2x8x8xf32>
    %51 = arith.addf %48, %50 : vector<2x8x8xf32>
    %cst_16 = arith.constant dense<0xFF800000> : vector<2x8xf32>
    %52 = vector.multi_reduction <maximumf>, %51, %cst_16 [2] : vector<2x8x8xf32> to vector<2x8xf32>
    %53 = vector.shape_cast %52 : vector<2x8xf32> to vector<2x8x1xf32>
    %54 = vector.broadcast %53 : vector<2x8x1xf32> to vector<2x8x8xf32>
    %55 = arith.subf %51, %54 : vector<2x8x8xf32>
    %56 = math.exp %55 : vector<2x8x8xf32>
    %cst_17 = arith.constant dense<0.000000e+00> : vector<2x8xf32>
    %57 = vector.multi_reduction <add>, %56, %cst_17 [2] : vector<2x8x8xf32> to vector<2x8xf32>
    %58 = vector.shape_cast %57 : vector<2x8xf32> to vector<2x8x1xf32>
    %59 = tpu.reciprocal %58 {approx = true} : vector<2x8x1xf32> -> vector<2x8x1xf32>
    %60 = vector.broadcast %59 : vector<2x8x1xf32> to vector<2x8x8xf32>
    %61 = arith.mulf %56, %60 : vector<2x8x8xf32>
    "tpu.trace_start"() <{level = 10 : i32, message = "bqk,bkd->bqd"}> : () -> ()
    %cst_18 = arith.constant dense<0.000000e+00> : vector<2x8x8xf32>
    %62 = tpu.matmul %61, %47, %cst_18 {dimension_numbers = #tpu.dot_dimension_numbers<[2], [1], [1], [2], [0, 0, 0, 1, 1, 2], [0], [0]>} : vector<2x8x8xf32>, vector<2x8x8xf32>, vector<2x8x8xf32> -> vector<2x8x8xf32>
    "tpu.trace_stop"() : () -> ()
    %63 = vector.shape_cast %62 : vector<2x8x8xf32> to vector<16x8xf32>
    %64 = vector.extract_strided_slice %9 {offsets = [0, 16], sizes = [16, 8], strides = [1, 1]} : vector<16x96xf32> to vector<16x8xf32>
    %65 = vector.extract_strided_slice %9 {offsets = [0, 48], sizes = [16, 8], strides = [1, 1]} : vector<16x96xf32> to vector<16x8xf32>
    %66 = vector.extract_strided_slice %9 {offsets = [0, 80], sizes = [16, 8], strides = [1, 1]} : vector<16x96xf32> to vector<16x8xf32>
    %cst_19 = arith.constant 0.353553385 : f32
    %67 = vector.broadcast %cst_19 : f32 to vector<16x8xf32>
    %68 = arith.mulf %64, %67 : vector<16x8xf32>
    %69 = vector.shape_cast %68 : vector<16x8xf32> to vector<2x8x8xf32>
    %70 = vector.shape_cast %65 : vector<16x8xf32> to vector<2x8x8xf32>
    %71 = vector.shape_cast %66 : vector<16x8xf32> to vector<2x8x8xf32>
    "tpu.trace_start"() <{level = 10 : i32, message = "bqd,bkd->bqk"}> : () -> ()
    %cst_20 = arith.constant dense<0.000000e+00> : vector<2x8x8xf32>
    %72 = tpu.matmul %69, %70, %cst_20 {dimension_numbers = #tpu.dot_dimension_numbers<[2], [2], [1], [1], [0, 0, 0, 1, 1, 1], [0], [0]>} : vector<2x8x8xf32>, vector<2x8x8xf32>, vector<2x8x8xf32> -> vector<2x8x8xf32>
    "tpu.trace_stop"() : () -> ()
    %73 = vector.shape_cast %15 : vector<8x8xf32> to vector<1x8x8xf32>
    %74 = vector.broadcast %73 : vector<1x8x8xf32> to vector<2x8x8xf32>
    %75 = arith.addf %72, %74 : vector<2x8x8xf32>
    %cst_21 = arith.constant dense<0xFF800000> : vector<2x8xf32>
    %76 = vector.multi_reduction <maximumf>, %75, %cst_21 [2] : vector<2x8x8xf32> to vector<2x8xf32>
    %77 = vector.shape_cast %76 : vector<2x8xf32> to vector<2x8x1xf32>
    %78 = vector.broadcast %77 : vector<2x8x1xf32> to vector<2x8x8xf32>
    %79 = arith.subf %75, %78 : vector<2x8x8xf32>
    %80 = math.exp %79 : vector<2x8x8xf32>
    %cst_22 = arith.constant dense<0.000000e+00> : vector<2x8xf32>
    %81 = vector.multi_reduction <add>, %80, %cst_22 [2] : vector<2x8x8xf32> to vector<2x8xf32>
    %82 = vector.shape_cast %81 : vector<2x8xf32> to vector<2x8x1xf32>
    %83 = tpu.reciprocal %82 {approx = true} : vector<2x8x1xf32> -> vector<2x8x1xf32>
    %84 = vector.broadcast %83 : vector<2x8x1xf32> to vector<2x8x8xf32>
    %85 = arith.mulf %80, %84 : vector<2x8x8xf32>
    "tpu.trace_start"() <{level = 10 : i32, message = "bqk,bkd->bqd"}> : () -> ()
    %cst_23 = arith.constant dense<0.000000e+00> : vector<2x8x8xf32>
    %86 = tpu.matmul %85, %71, %cst_23 {dimension_numbers = #tpu.dot_dimension_numbers<[2], [1], [1], [2], [0, 0, 0, 1, 1, 2], [0], [0]>} : vector<2x8x8xf32>, vector<2x8x8xf32>, vector<2x8x8xf32> -> vector<2x8x8xf32>
    "tpu.trace_stop"() : () -> ()
    %87 = vector.shape_cast %86 : vector<2x8x8xf32> to vector<16x8xf32>
    %88 = vector.extract_strided_slice %9 {offsets = [0, 24], sizes = [16, 8], strides = [1, 1]} : vector<16x96xf32> to vector<16x8xf32>
    %89 = vector.extract_strided_slice %9 {offsets = [0, 56], sizes = [16, 8], strides = [1, 1]} : vector<16x96xf32> to vector<16x8xf32>
    %90 = vector.extract_strided_slice %9 {offsets = [0, 88], sizes = [16, 8], strides = [1, 1]} : vector<16x96xf32> to vector<16x8xf32>
    %cst_24 = arith.constant 0.353553385 : f32
    %91 = vector.broadcast %cst_24 : f32 to vector<16x8xf32>
    %92 = arith.mulf %88, %91 : vector<16x8xf32>
    %93 = vector.shape_cast %92 : vector<16x8xf32> to vector<2x8x8xf32>
    %94 = vector.shape_cast %89 : vector<16x8xf32> to vector<2x8x8xf32>
    %95 = vector.shape_cast %90 : vector<16x8xf32> to vector<2x8x8xf32>
    "tpu.trace_start"() <{level = 10 : i32, message = "bqd,bkd->bqk"}> : () -> ()
    %cst_25 = arith.constant dense<0.000000e+00> : vector<2x8x8xf32>
    %96 = tpu.matmul %93, %94, %cst_25 {dimension_numbers = #tpu.dot_dimension_numbers<[2], [2], [1], [1], [0, 0, 0, 1, 1, 1], [0], [0]>} : vector<2x8x8xf32>, vector<2x8x8xf32>, vector<2x8x8xf32> -> vector<2x8x8xf32>
    "tpu.trace_stop"() : () -> ()
    %97 = vector.shape_cast %15 : vector<8x8xf32> to vector<1x8x8xf32>
    %98 = vector.broadcast %97 : vector<1x8x8xf32> to vector<2x8x8xf32>
    %99 = arith.addf %96, %98 : vector<2x8x8xf32>
    %cst_26 = arith.constant dense<0xFF800000> : vector<2x8xf32>
    %100 = vector.multi_reduction <maximumf>, %99, %cst_26 [2] : vector<2x8x8xf32> to vector<2x8xf32>
    %101 = vector.shape_cast %100 : vector<2x8xf32> to vector<2x8x1xf32>
    %102 = vector.broadcast %101 : vector<2x8x1xf32> to vector<2x8x8xf32>
    %103 = arith.subf %99, %102 : vector<2x8x8xf32>
    %104 = math.exp %103 : vector<2x8x8xf32>
    %cst_27 = arith.constant dense<0.000000e+00> : vector<2x8xf32>
    %105 = vector.multi_reduction <add>, %104, %cst_27 [2] : vector<2x8x8xf32> to vector<2x8xf32>
    %106 = vector.shape_cast %105 : vector<2x8xf32> to vector<2x8x1xf32>
    %107 = tpu.reciprocal %106 {approx = true} : vector<2x8x1xf32> -> vector<2x8x1xf32>
    %108 = vector.broadcast %107 : vector<2x8x1xf32> to vector<2x8x8xf32>
    %109 = arith.mulf %104, %108 : vector<2x8x8xf32>
    "tpu.trace_start"() <{level = 10 : i32, message = "bqk,bkd->bqd"}> : () -> ()
    %cst_28 = arith.constant dense<0.000000e+00> : vector<2x8x8xf32>
    %110 = tpu.matmul %109, %95, %cst_28 {dimension_numbers = #tpu.dot_dimension_numbers<[2], [1], [1], [2], [0, 0, 0, 1, 1, 2], [0], [0]>} : vector<2x8x8xf32>, vector<2x8x8xf32>, vector<2x8x8xf32> -> vector<2x8x8xf32>
    "tpu.trace_stop"() : () -> ()
    %111 = vector.shape_cast %110 : vector<2x8x8xf32> to vector<16x8xf32>
    %112 = tpu.concatenate %39, %63, %87, %111 in 1 : vector<16x8xf32>, vector<16x8xf32>, vector<16x8xf32>, vector<16x8xf32> -> vector<16x32xf32>
    %c0_29 = arith.constant 0 : index
    %c0_30 = arith.constant 0 : index
    %113 = vector.load %arg8[%c0_29, %c0_30] : memref<16x32xf32, #tpu.memory_space<vmem>>, vector<16x32xf32>
    %c0_31 = arith.constant 0 : index
    %c0_32 = arith.constant 0 : index
    %114 = vector.load %arg5[%c0_31, %c0_32] : memref<32x32xf32, #tpu.memory_space<vmem>>, vector<32x32xf32>
    %cst_33 = arith.constant dense<0.000000e+00> : vector<16x32xf32>
    %115 = tpu.matmul %112, %114, %cst_33 {dimension_numbers = #tpu.dot_dimension_numbers<[1], [0], [0], [1], [0, 0, 1, 1], [], []>} : vector<16x32xf32>, vector<32x32xf32>, vector<16x32xf32> -> vector<16x32xf32>
    %116 = arith.addf %113, %115 : vector<16x32xf32>
    %c0_34 = arith.constant 0 : index
    %c0_35 = arith.constant 0 : index
    %117 = vector.load %arg8[%c0_34, %c0_35] : memref<16x32xf32, #tpu.memory_space<vmem>>, vector<16x32xf32>
    tpu.vector_store %arg8[%c0_34, %c0_35], %116 {strides = array<i32>} : memref<16x32xf32, #tpu.memory_space<vmem>>, vector<16x32xf32>,
    %c0_i32_36 = arith.constant 0 : i32
    %118 = arith.cmpi eq, %arg1, %c0_i32_36 : i32
    %119 = arith.extui %118 : i1 to i32
    %c0_i32_37 = arith.constant 0 : i32
    %120 = arith.cmpi ne, %119, %c0_i32_37 : i32
    scf.if %120 {
      %c0_38 = arith.constant 0 : index
      %c0_39 = arith.constant 0 : index
      %121 = vector.load %arg8[%c0_38, %c0_39] : memref<16x32xf32, #tpu.memory_space<vmem>>, vector<16x32xf32>
      %c0_40 = arith.constant 0 : index
      %c0_41 = arith.constant 0 : index
      %122 = vector.load %arg6[%c0_40, %c0_41] : memref<1x32xf32, #tpu.memory_space<vmem>>, vector<1x32xf32>
      %123 = vector.broadcast %122 : vector<1x32xf32> to vector<16x32xf32>
      %124 = arith.addf %121, %123 : vector<16x32xf32>
      %125 = vector.shape_cast %124 : vector<16x32xf32> to vector<2x8x32xf32>
      %c0_42 = arith.constant 0 : index
      %c0_43 = arith.constant 0 : index
      %c0_44 = arith.constant 0 : index
      %126 = vector.load %arg7[%c0_42, %c0_43, %c0_44] : memref<2x8x32xf32, #tpu.memory_space<vmem>>, vector<2x8x32xf32>
      tpu.vector_store %arg7[%c0_42, %c0_43, %c0_44], %125 {strides = array<i32>} : memref<2x8x32xf32, #tpu.memory_space<vmem>>, vector<2x8x32xf32>,
    } else {
    }
    return
  }
  func.func @transform_0(%arg0: i32, %arg1: i32) -> (i32, i32, i32) {
    %c0_i32 = arith.constant 0 : i32
    %c0_i32_0 = arith.constant 0 : i32
    %c0_i32_1 = arith.constant 0 : i32
    return %arg0, %c0_i32, %c0_i32_0 : i32, i32, i32
  }
  func.func @transform_1(%arg0: i32, %arg1: i32) -> (i32, i32) {
    %c0_i32 = arith.constant 0 : i32
    %c0_i32_0 = arith.constant 0 : i32
    return %c0_i32, %arg1 : i32, i32
  }
  func.func @transform_2(%arg0: i32, %arg1: i32) -> (i32, i32) {
    %c0_i32 = arith.constant 0 : i32
    %c0_i32_0 = arith.constant 0 : i32
    return %c0_i32, %arg1 : i32, i32
  }
  func.func @transform_3(%arg0: i32, %arg1: i32) -> (i32, i32) {
    %c0_i32 = arith.constant 0 : i32
    %c0_i32_0 = arith.constant 0 : i32
    return %arg1, %c0_i32 : i32, i32
  }
  func.func @transform_4(%arg0: i32, %arg1: i32) -> (i32, i32) {
    %c0_i32 = arith.constant 0 : i32
    %c0_i32_0 = arith.constant 0 : i32
    %c0_i32_1 = arith.constant 0 : i32
    return %c0_i32, %c0_i32_0 : i32, i32
  }
  func.func @transform_5(%arg0: i32, %arg1: i32) -> (i32, i32, i32) {
    %c0_i32 = arith.constant 0 : i32
    %c0_i32_0 = arith.constant 0 : i32
    %c0_i32_1 = arith.constant 0 : i32
    return %arg0, %c0_i32, %c0_i32_0 : i32, i32, i32
  }
}

</mosaic_0001>

<llo_original>
// kernel: tpu_custom_call.1
$region0: #{tpu_custom_call.1}
  #allocation0 [shape = 'u32[]', space=smem, size = 0x4, offset = 0x4, fixed_abs, tag = 'smem constant byte address 0x4 - core index']
  #allocation1 [shape = 'u32[144,128]{1,0:T(1,128)}', space=vmem, size = 0x12000, scoped, tag = 'internal scratch']
  #allocation2 [shape = 'f32[16,32]{1,0:T(8,128)}', space=vmem, size = 0x2000, scoped, tag = 'scratch operand']
  %s0 = inlined_call_operand.hbm [shape: f32[2,8,32], index: 0, kind: input, shape index: {}]
  %s1 = inlined_call_operand.hbm [shape: f32[32,96], index: 1, kind: input, shape index: {}]
  %s2 = inlined_call_operand.vmem [shape: f32[1,96], index: 2, kind: input, shape index: {}]
  %s3 = inlined_call_operand.hbm [shape: f32[32,32], index: 3, kind: input, shape index: {}]
  %s4 = inlined_call_operand.vmem [shape: f32[1,32], index: 4, kind: input, shape index: {}]
  %s5 = inlined_call_operand.hbm [shape: f32[2,8,32], index: 5, kind: output, shape index: {}]
  %s6 = sld [smem:[#allocation0]]
  $region50: #{tpu_custom_call.1} parent=0
    _
  %s8 = ssub.s32 1, %s6
  %s9 = scalar_select 0, %s8, %s6
  $region1: #{tpu_custom_call.1} parent=0
    #allocation3 [shape = 'u8[8192]{0}', space=vmem, size = 0x2000, scoped, tag = 'input window, operand 0, single buffered']
    #allocation4 [shape = 's32[1]{0}', space=sflag, size = 0x4, scoped, tag = 'scoped memory for tpu_custom_call.1']
    #allocation5 [shape = 's32[1]{0}', space=sflag, size = 0x4, scoped, tag = 'scoped memory for tpu_custom_call.1']
    #allocation6 [shape = 'u8[16384]{0}', space=vmem, size = 0x4000, scoped, tag = 'input window, operand 1, single buffered']
    #allocation7 [shape = 's32[1]{0}', space=sflag, size = 0x4, scoped, tag = 'scoped memory for tpu_custom_call.1']
    #allocation8 [shape = 'u8[16384]{0}', space=vmem, size = 0x4000, scoped, tag = 'input window, operand 3, single buffered']
    #allocation9 [shape = 'u8[8192]{0}', space=vmem, size = 0x2000, scoped, tag = 'output window, operand 0, single buffered']
    %10 = vsyncpa [#allocation4], 0
    %11 = vsyncpa [#allocation7], 0
    %12 = vsyncpa [#allocation5], 0
    // Predicated region
    $region2: #{tpu_custom_call.1} parent=1 // pred_check
      _
    $region3: #{tpu_custom_call.1} parent=1 // pred_check_branch
      %14 = sbr.rel (0) target = $region5
    $region4: #{tpu_custom_call.1} parent=1 // pred_region
      %s16 = ssub.s32 256, 256
      %17 = vsyncadd [#allocation4], %s16
      %s18 = sshll.u32 [#allocation3], 4
      %s19 = int_to_ptr.vmem [resolvable:$true] %s18
      %24 = dma.hbm_to_vmem [thread:$0]  %s0, 256, %s19, [#allocation4], 128, 128, 8
    $region5: #{tpu_custom_call.1} parent=1 // pred_fallthru
      _
    // Predicated region
    $region6: #{tpu_custom_call.1} parent=1 // pred_check
      _
    $region7: #{tpu_custom_call.1} parent=1 // pred_check_branch
      %26 = sbr.rel (0) target = $region9
    $region8: #{tpu_custom_call.1} parent=1 // pred_region
      %s28 = ssub.s32 512, 512
      %29 = vsyncadd [#allocation7], %s28
      %s30 = sshll.u32 [#allocation6], 4
      %s31 = int_to_ptr.vmem [resolvable:$true] %s30
      %36 = dma.hbm_to_vmem [thread:$0]  %s1, 512, %s31, [#allocation7], 128, 128, 8
    $region9: #{tpu_custom_call.1} parent=1 // pred_fallthru
      _
    // Predicated region
    $region10: #{tpu_custom_call.1} parent=1 // pred_check
      _
    $region11: #{tpu_custom_call.1} parent=1 // pred_check_branch
      %38 = sbr.rel (0) target = $region13
    $region12: #{tpu_custom_call.1} parent=1 // pred_region
      _
    $region13: #{tpu_custom_call.1} parent=1 // pred_fallthru
      _
    // Predicated region
    $region14: #{tpu_custom_call.1} parent=1 // pred_check
      _
    $region15: #{tpu_custom_call.1} parent=1 // pred_check_branch
      %40 = sbr.rel (0) target = $region17
    $region16: #{tpu_custom_call.1} parent=1 // pred_region
      %s42 = ssub.s32 512, 512
      %43 = vsyncadd [#allocation7], %s42
      %s44 = sshll.u32 [#allocation8], 4
      %s45 = int_to_ptr.vmem [resolvable:$true] %s44
      %50 = dma.hbm_to_vmem [thread:$0]  %s3, 512, %s45, [#allocation7], 128, 128, 8
    $region17: #{tpu_custom_call.1} parent=1 // pred_fallthru
      _
    // Predicated region
    $region18: #{tpu_custom_call.1} parent=1 // pred_check
      _
    $region19: #{tpu_custom_call.1} parent=1 // pred_check_branch
      %52 = sbr.rel (0) target = $region21
    $region20: #{tpu_custom_call.1} parent=1 // pred_region
      _
    $region21: #{tpu_custom_call.1} parent=1 // pred_fallthru
      _
    // Predicated region
    $region22: #{tpu_custom_call.1} parent=1 // pred_check
      _
    $region23: #{tpu_custom_call.1} parent=1 // pred_check_branch
      %54 = sbr.rel (0) target = $region25
    $region24: #{tpu_custom_call.1} parent=1 // pred_region
      %55 = dma.done [#allocation4], 256
    $region25: #{tpu_custom_call.1} parent=1 // pred_fallthru
      _
    // Predicated region
    $region26: #{tpu_custom_call.1} parent=1 // pred_check
      _
    $region27: #{tpu_custom_call.1} parent=1 // pred_check_branch
      %57 = sbr.rel (0) target = $region29
    $region28: #{tpu_custom_call.1} parent=1 // pred_region
      %58 = dma.done [#allocation7], 512
    $region29: #{tpu_custom_call.1} parent=1 // pred_fallthru
      _
    // Predicated region
    $region30: #{tpu_custom_call.1} parent=1 // pred_check
      _
    $region31: #{tpu_custom_call.1} parent=1 // pred_check_branch
      %60 = sbr.rel (0) target = $region33
    $region32: #{tpu_custom_call.1} parent=1 // pred_region
      %61 = dma.done [#allocation7], 512
    $region33: #{tpu_custom_call.1} parent=1 // pred_fallthru
      _
    %p62 = scmp.eq.s32.totalorder 0, 0
    // Predicated region
    $region34: #{tpu_custom_call.1} parent=1 // pred_check
      %p63 = pneg %p62
    $region35: #{tpu_custom_call.1} parent=1 // pred_check_branch
      %65 = sbr.rel (%p63) target = $region37
    $region36: #{tpu_custom_call.1} parent=1 // pred_region
      %vm66 = vcmask 261120
      %67 = vst.msk [vmem:[#allocation2] sm:$0xff] %vm66, 0.0
      %68 = vst.msk [vmem:[#allocation2 + $0x8] sm:$0xff] %vm66, 0.0
    $region37: #{tpu_custom_call.1} parent=1 // pred_fallthru
      _
    %v69 = vld [vmem:[#allocation3] sm:$0xff]
    %v70 = vld [vmem:[#allocation3 + $0x8] sm:$0xff]
    %v71 = vld [vmem:[#allocation6] sm:$0xff]
    %v72 = vld [vmem:[#allocation6 + $0x8] sm:$0xff]
    %v73 = vld [vmem:[#allocation6 + $0x10] sm:$0xff]
    %v74 = vld [vmem:[#allocation6 + $0x18] sm:$0xff]
    %v75 = vld [vmem:[%s2] sm:$0x1]
    %v77 = vlaneseq
    %v78 = vshrl.u32 %v77, 7
    %v79 = vsub.s32 0, %v78
    %v80 = vrot.slane %v75, %v79
    %vm82 = vcmask 261120
    %v84 = vsel %vm82, %v69, 0
    %v87 = vsel %vm82, %v70, 0
    %89 = vmatprep.subr.mxu0 0.0
    %90 = vmatpush1.msra.mxu0 %v71
    %91 = vmatprep.subr.mxu0 0.0
    %92 = vmatpush1.msra.mxu0 %v72
    %93 = vmatprep.subr.mxu0 0.0
    %94 = vmatpush1.msra.mxu0 %v73
    %95 = vmatprep.subr.mxu0 0.0
    %96 = vmatpush1.msra.mxu0 %v74
    %97 = vmatprep.subr.mxu0 0.0
    %98 = vmatpush1.msra.mxu0 0.0
    %99 = vmatprep.subr.mxu0 0.0
    %100 = vmatpush1.msra.mxu0 0.0
    %101 = vmatprep.subr.mxu0 0.0
    %102 = vmatpush1.msra.mxu0 0.0
    %103 = vmatprep.subr.mxu0 0.0
    %104 = vmatpush1.msra.mxu0 0.0
    %105 = vmatprep.subr.mxu0 0.0
    %106 = vmatpush1.msra.mxu0 0.0
    %107 = vmatprep.subr.mxu0 0.0
    %108 = vmatpush1.msra.mxu0 0.0
    %109 = vmatprep.subr.mxu0 0.0
    %110 = vmatpush1.msra.mxu0 0.0
    %111 = vmatprep.subr.mxu0 0.0
    %112 = vmatpush1.msra.mxu0 0.0
    %113 = vmatprep.subr.mxu0 0.0
    %114 = vmatpush1.msra.mxu0 0.0
    %115 = vmatprep.subr.mxu0 0.0
    %116 = vmatpush1.msra.mxu0 0.0
    %117 = vmatprep.subr.mxu0 0.0
    %118 = vmatpush1.msra.mxu0 0.0
    %119 = vmatprep.subr.mxu0 0.0
    %120 = vmatpush1.msra.mxu0 0.0
    %121 = vmatprep.subr.mxu0 0.0
    %122 = vmatpush1.msra.mxu0 0.0
    %123 = vmatprep.subr.mxu0 0.0
    %124 = vmatpush1.msra.mxu0 0.0
    %125 = vmatprep.subr.mxu0 0.0
    %126 = vmatpush1.msra.mxu0 0.0
    %127 = vmatprep.subr.mxu0 0.0
    %128 = vmatpush1.msra.mxu0 0.0
    %129 = vmatprep.subr.mxu0 0.0
    %130 = vmatpush1.msra.mxu0 0.0
    %131 = vmatprep.subr.mxu0 0.0
    %132 = vmatpush1.msra.mxu0 0.0
    %133 = vmatprep.subr.mxu0 0.0
    %134 = vmatpush1.msra.mxu0 0.0
    %135 = vmatprep.subr.mxu0 0.0
    %136 = vmatpush1.msra.mxu0 0.0
    %137 = vmatprep.subr.mxu0 0.0
    %138 = vmatpush1.msra.mxu0 0.0
    %139 = vmatprep.subr.mxu0 0.0
    %140 = vmatpush1.msra.mxu0 0.0
    %141 = vmatprep.subr.mxu0 0.0
    %142 = vmatpush1.msra.mxu0 0.0
    %143 = vmatprep.subr.mxu0 0.0
    %144 = vmatpush1.msra.mxu0 0.0
    %145 = vmatprep.subr.mxu0 0.0
    %146 = vmatpush1.msra.mxu0 0.0
    %147 = vmatprep.subr.mxu0 0.0
    %148 = vmatpush1.msra.mxu0 0.0
    %149 = vmatprep.subr.mxu0 0.0
    %150 = vmatpush1.msra.mxu0 0.0
    %151 = vmatprep.subr.mxu0 0.0
    %152 = vmatpush1.msra.mxu0 0.0
    %153 = vmatprep.mubr.f32.mxu0 0.0
    %154 = vmatmul.mubr.f32.gmra.mrb[0].mxu0 %v84
    %v155 = vpop.f32.mrb[0].mxu0
    %v156 = vadd.f32 %v80, %v155
    %v157 = vpop.f32.mrb[0].mxu0
    %158 = vmatprep.mubr.f32.mxu0 0.0
    %159 = vmatmul.mubr.f32.gmra.mrb[0].mxu0 %v87
    %v160 = vpop.f32.mrb[0].mxu0
    %v161 = vadd.f32 %v80, %v160
    %v162 = vpop.f32.mrb[0].mxu0
    %163 = vdwg.mxu0
    %v164 = vlaneseq
    %v165 = vshrl.u32 %v164, 7
    %v166 = vlaneseq
    %v167 = vand.u32 %v166, 127
    %vm168 = vcmp.le.s32.totalorder %v167, %v165
    %v169 = vsel %vm168, 0.0, -10000.0
    %v170 = vmul.f32 %v156, 0.35355338
    %v171 = vmul.f32 %v161, 0.35355338
    %173 = vrot.lane.b32.xlu0 %v156, 96
    %v174 = vpop.permute.xlu0 %173
    %vm175 = vcmask 64512
    %v177 = vsel %vm175, %v170, 0
    %v179 = vsel %vm175, %v174, 0
    %181 = vmatprep.subr.mxu0 0.0
    %182 = vmatpush1.xpose.msra.mxu0 %v179
    %183 = vmatprep.subr.mxu0 0.0
    %184 = vmatpush1.xpose.msra.mxu0 0.0
    %185 = vmatprep.subr.mxu0 0.0
    %186 = vmatpush1.xpose.msra.mxu0 0.0
    %187 = vmatprep.subr.mxu0 0.0
    %188 = vmatpush1.xpose.msra.mxu0 0.0
    %189 = vmatprep.subr.mxu0 0.0
    %190 = vmatpush1.xpose.msra.mxu0 0.0
    %191 = vmatprep.subr.mxu0 0.0
    %192 = vmatpush1.xpose.msra.mxu0 0.0
    %193 = vmatprep.subr.mxu0 0.0
    %194 = vmatpush1.xpose.msra.mxu0 0.0
    %195 = vmatprep.subr.mxu0 0.0
    %196 = vmatpush1.xpose.msra.mxu0 0.0
    %197 = vmatprep.subr.mxu0 0.0
    %198 = vmatpush1.xpose.msra.mxu0 0.0
    %199 = vmatprep.subr.mxu0 0.0
    %200 = vmatpush1.xpose.msra.mxu0 0.0
    %201 = vmatprep.subr.mxu0 0.0
    %202 = vmatpush1.xpose.msra.mxu0 0.0
    %203 = vmatprep.subr.mxu0 0.0
    %204 = vmatpush1.xpose.msra.mxu0 0.0
    %205 = vmatprep.subr.mxu0 0.0
    %206 = vmatpush1.xpose.msra.mxu0 0.0
    %207 = vmatprep.subr.mxu0 0.0
    %208 = vmatpush1.xpose.msra.mxu0 0.0
    %209 = vmatprep.subr.mxu0 0.0
    %210 = vmatpush1.xpose.msra.mxu0 0.0
    %211 = vmatprep.subr.mxu0 0.0
    %212 = vmatpush1.xpose.msra.mxu0 0.0
    %213 = vmatprep.subr.mxu0 0.0
    %214 = vmatpush1.xpose.msra.mxu0 0.0
    %215 = vmatprep.subr.mxu0 0.0
    %216 = vmatpush1.xpose.msra.mxu0 0.0
    %217 = vmatprep.subr.mxu0 0.0
    %218 = vmatpush1.xpose.msra.mxu0 0.0
    %219 = vmatprep.subr.mxu0 0.0
    %220 = vmatpush1.xpose.msra.mxu0 0.0
    %221 = vmatprep.subr.mxu0 0.0
    %222 = vmatpush1.xpose.msra.mxu0 0.0
    %223 = vmatprep.subr.mxu0 0.0
    %224 = vmatpush1.xpose.msra.mxu0 0.0
    %225 = vmatprep.subr.mxu0 0.0
    %226 = vmatpush1.xpose.msra.mxu0 0.0
    %227 = vmatprep.subr.mxu0 0.0
    %228 = vmatpush1.xpose.msra.mxu0 0.0
    %229 = vmatprep.subr.mxu0 0.0
    %230 = vmatpush1.xpose.msra.mxu0 0.0
    %231 = vmatprep.subr.mxu0 0.0
    %232 = vmatpush1.xpose.msra.mxu0 0.0
    %233 = vmatprep.subr.mxu0 0.0
    %234 = vmatpush1.xpose.msra.mxu0 0.0
    %235 = vmatprep.subr.mxu0 0.0
    %236 = vmatpush1.xpose.msra.mxu0 0.0
    %237 = vmatprep.subr.mxu0 0.0
    %238 = vmatpush1.xpose.msra.mxu0 0.0
    %239 = vmatprep.subr.mxu0 0.0
    %240 = vmatpush1.xpose.msra.mxu0 0.0
    %241 = vmatprep.subr.mxu0 0.0
    %242 = vmatpush1.xpose.msra.mxu0 0.0
    %243 = vmatprep.subr.mxu0 0.0
    %244 = vmatpush1.xpose.msra.mxu0 0.0
    %245 = vmatprep.mubr.f32.mxu0 0.0
    %246 = vmatmul.mubr.f32.gmra.mrb[0].mxu0 %v177
    %v247 = vpop.f32.mrb[0].mxu0
    %v248 = vadd.f32 %v169, %v247
    %v249 = vpop.f32.mrb[0].mxu0
    %250 = vdwg.mxu0
    %252 = vrot.lane.b32.xlu0 %v161, 96
    %v253 = vpop.permute.xlu0 %252
    %v255 = vsel %vm175, %v171, 0
    %v257 = vsel %vm175, %v253, 0
    %259 = vmatprep.subr.mxu0 0.0
    %260 = vmatpush1.xpose.msra.mxu0 %v257
    %261 = vmatprep.subr.mxu0 0.0
    %262 = vmatpush1.xpose.msra.mxu0 0.0
    %263 = vmatprep.subr.mxu0 0.0
    %264 = vmatpush1.xpose.msra.mxu0 0.0
    %265 = vmatprep.subr.mxu0 0.0
    %266 = vmatpush1.xpose.msra.mxu0 0.0
    %267 = vmatprep.subr.mxu0 0.0
    %268 = vmatpush1.xpose.msra.mxu0 0.0
    %269 = vmatprep.subr.mxu0 0.0
    %270 = vmatpush1.xpose.msra.mxu0 0.0
    %271 = vmatprep.subr.mxu0 0.0
    %272 = vmatpush1.xpose.msra.mxu0 0.0
    %273 = vmatprep.subr.mxu0 0.0
    %274 = vmatpush1.xpose.msra.mxu0 0.0
    %275 = vmatprep.subr.mxu0 0.0
    %276 = vmatpush1.xpose.msra.mxu0 0.0
    %277 = vmatprep.subr.mxu0 0.0
    %278 = vmatpush1.xpose.msra.mxu0 0.0
    %279 = vmatprep.subr.mxu0 0.0
    %280 = vmatpush1.xpose.msra.mxu0 0.0
    %281 = vmatprep.subr.mxu0 0.0
    %282 = vmatpush1.xpose.msra.mxu0 0.0
    %283 = vmatprep.subr.mxu0 0.0
    %284 = vmatpush1.xpose.msra.mxu0 0.0
    %285 = vmatprep.subr.mxu0 0.0
    %286 = vmatpush1.xpose.msra.mxu0 0.0
    %287 = vmatprep.subr.mxu0 0.0
    %288 = vmatpush1.xpose.msra.mxu0 0.0
    %289 = vmatprep.subr.mxu0 0.0
    %290 = vmatpush1.xpose.msra.mxu0 0.0
    %291 = vmatprep.subr.mxu0 0.0
    %292 = vmatpush1.xpose.msra.mxu0 0.0
    %293 = vmatprep.subr.mxu0 0.0
    %294 = vmatpush1.xpose.msra.mxu0 0.0
    %295 = vmatprep.subr.mxu0 0.0
    %296 = vmatpush1.xpose.msra.mxu0 0.0
    %297 = vmatprep.subr.mxu0 0.0
    %298 = vmatpush1.xpose.msra.mxu0 0.0
    %299 = vmatprep.subr.mxu0 0.0
    %300 = vmatpush1.xpose.msra.mxu0 0.0
    %301 = vmatprep.subr.mxu0 0.0
    %302 = vmatpush1.xpose.msra.mxu0 0.0
    %303 = vmatprep.subr.mxu0 0.0
    %304 = vmatpush1.xpose.msra.mxu0 0.0
    %305 = vmatprep.subr.mxu0 0.0
    %306 = vmatpush1.xpose.msra.mxu0 0.0
    %307 = vmatprep.subr.mxu0 0.0
    %308 = vmatpush1.xpose.msra.mxu0 0.0
    %309 = vmatprep.subr.mxu0 0.0
    %310 = vmatpush1.xpose.msra.mxu0 0.0
    %311 = vmatprep.subr.mxu0 0.0
    %312 = vmatpush1.xpose.msra.mxu0 0.0
    %313 = vmatprep.subr.mxu0 0.0
    %314 = vmatpush1.xpose.msra.mxu0 0.0
    %315 = vmatprep.subr.mxu0 0.0
    %316 = vmatpush1.xpose.msra.mxu0 0.0
    %317 = vmatprep.subr.mxu0 0.0
    %318 = vmatpush1.xpose.msra.mxu0 0.0
    %319 = vmatprep.subr.mxu0 0.0
    %320 = vmatpush1.xpose.msra.mxu0 0.0
    %321 = vmatprep.subr.mxu0 0.0
    %322 = vmatpush1.xpose.msra.mxu0 0.0
    %323 = vmatprep.mubr.f32.mxu0 0.0
    %324 = vmatmul.mubr.f32.gmra.mrb[0].mxu0 %v255
    %v325 = vpop.f32.mrb[0].mxu0
    %v326 = vadd.f32 %v169, %v325
    %v327 = vpop.f32.mrb[0].mxu0
    %328 = vdwg.mxu0
    %v329 = vsel %vm175, %v248, -inf
    %330 = vmax.xlane.f32.xlu0 %v329
    %v331 = vpop.xlane.xlu0 %330
    %v332 = vsel %vm175, %v326, -inf
    %333 = vmax.xlane.f32.xlu0 %v332
    %v334 = vpop.xlane.xlu0 %333
    %v335 = vsub.f32 %v248, %v331
    %v336 = vsub.f32 %v326, %v334
    %v337 = vmul.f32 %v335, 1.442695
    %v338 = vpow.pop %v337
    %v339 = vmul.f32 %v336, 1.442695
    %v340 = vpow.pop %v339
    %v341 = vsel %vm175, %v338, 0.0
    %342 = vadd.xlane.f32.xlu0 %v341
    %v343 = vpop.xlane.xlu0 %342
    %v344 = vsel %vm175, %v340, 0.0
    %345 = vadd.xlane.f32.xlu0 %v344
    %v346 = vpop.xlane.xlu0 %345
    %v347 = vrcp.pop %v343
    %v348 = vrcp.pop %v346
    %v349 = vmul.f32 %v338, %v347
    %v350 = vmul.f32 %v340, %v348
    %351 = vrot.lane.b32.xlu0 %v156, 64
    %v352 = vpop.permute.xlu0 %351
    %v355 = vsel %vm175, %v349, 0
    %357 = vmatprep.subr.mxu0 0.0
    %358 = vmatpush1.msra.mxu0 %v352
    %359 = vmatprep.subr.mxu0 0.0
    %360 = vmatpush1.msra.mxu0 0.0
    %361 = vmatprep.subr.mxu0 0.0
    %362 = vmatpush1.msra.mxu0 0.0
    %363 = vmatprep.subr.mxu0 0.0
    %364 = vmatpush1.msra.mxu0 0.0
    %365 = vmatprep.subr.mxu0 0.0
    %366 = vmatpush1.msra.mxu0 0.0
    %367 = vmatprep.subr.mxu0 0.0
    %368 = vmatpush1.msra.mxu0 0.0
    %369 = vmatprep.subr.mxu0 0.0
    %370 = vmatpush1.msra.mxu0 0.0
    %371 = vmatprep.subr.mxu0 0.0
    %372 = vmatpush1.msra.mxu0 0.0
    %373 = vmatprep.subr.mxu0 0.0
    %374 = vmatpush1.msra.mxu0 0.0
    %375 = vmatprep.subr.mxu0 0.0
    %376 = vmatpush1.msra.mxu0 0.0
    %377 = vmatprep.subr.mxu0 0.0
    %378 = vmatpush1.msra.mxu0 0.0
    %379 = vmatprep.subr.mxu0 0.0
    %380 = vmatpush1.msra.mxu0 0.0
    %381 = vmatprep.subr.mxu0 0.0
    %382 = vmatpush1.msra.mxu0 0.0
    %383 = vmatprep.subr.mxu0 0.0
    %384 = vmatpush1.msra.mxu0 0.0
    %385 = vmatprep.subr.mxu0 0.0
    %386 = vmatpush1.msra.mxu0 0.0
    %387 = vmatprep.subr.mxu0 0.0
    %388 = vmatpush1.msra.mxu0 0.0
    %389 = vmatprep.subr.mxu0 0.0
    %390 = vmatpush1.msra.mxu0 0.0
    %391 = vmatprep.subr.mxu0 0.0
    %392 = vmatpush1.msra.mxu0 0.0
    %393 = vmatprep.subr.mxu0 0.0
    %394 = vmatpush1.msra.mxu0 0.0
    %395 = vmatprep.subr.mxu0 0.0
    %396 = vmatpush1.msra.mxu0 0.0
    %397 = vmatprep.subr.mxu0 0.0
    %398 = vmatpush1.msra.mxu0 0.0
    %399 = vmatprep.subr.mxu0 0.0
    %400 = vmatpush1.msra.mxu0 0.0
    %401 = vmatprep.subr.mxu0 0.0
    %402 = vmatpush1.msra.mxu0 0.0
    %403 = vmatprep.subr.mxu0 0.0
    %404 = vmatpush1.msra.mxu0 0.0
    %405 = vmatprep.subr.mxu0 0.0
    %406 = vmatpush1.msra.mxu0 0.0
    %407 = vmatprep.subr.mxu0 0.0
    %408 = vmatpush1.msra.mxu0 0.0
    %409 = vmatprep.subr.mxu0 0.0
    %410 = vmatpush1.msra.mxu0 0.0
    %411 = vmatprep.subr.mxu0 0.0
    %412 = vmatpush1.msra.mxu0 0.0
    %413 = vmatprep.subr.mxu0 0.0
    %414 = vmatpush1.msra.mxu0 0.0
    %415 = vmatprep.subr.mxu0 0.0
    %416 = vmatpush1.msra.mxu0 0.0
    %417 = vmatprep.subr.mxu0 0.0
    %418 = vmatpush1.msra.mxu0 0.0
    %419 = vmatprep.subr.mxu0 0.0
    %420 = vmatpush1.msra.mxu0 0.0
    %421 = vmatprep.mubr.f32.mxu0 0.0
    %422 = vmatmul.mubr.f32.gmra.mrb[0].mxu0 %v355
    %v423 = vpop.f32.mrb[0].mxu0
    %v424 = vadd.f32 0.0, %v423
    %v425 = vpop.f32.mrb[0].mxu0
    %426 = vdwg.mxu0
    %427 = vrot.lane.b32.xlu0 %v161, 64
    %v428 = vpop.permute.xlu0 %427
    %v431 = vsel %vm175, %v350, 0
    %433 = vmatprep.subr.mxu0 0.0
    %434 = vmatpush1.msra.mxu0 %v428
    %435 = vmatprep.subr.mxu0 0.0
    %436 = vmatpush1.msra.mxu0 0.0
    %437 = vmatprep.subr.mxu0 0.0
    %438 = vmatpush1.msra.mxu0 0.0
    %439 = vmatprep.subr.mxu0 0.0
    %440 = vmatpush1.msra.mxu0 0.0
    %441 = vmatprep.subr.mxu0 0.0
    %442 = vmatpush1.msra.mxu0 0.0
    %443 = vmatprep.subr.mxu0 0.0
    %444 = vmatpush1.msra.mxu0 0.0
    %445 = vmatprep.subr.mxu0 0.0
    %446 = vmatpush1.msra.mxu0 0.0
    %447 = vmatprep.subr.mxu0 0.0
    %448 = vmatpush1.msra.mxu0 0.0
    %449 = vmatprep.subr.mxu0 0.0
    %450 = vmatpush1.msra.mxu0 0.0
    %451 = vmatprep.subr.mxu0 0.0
    %452 = vmatpush1.msra.mxu0 0.0
    %453 = vmatprep.subr.mxu0 0.0
    %454 = vmatpush1.msra.mxu0 0.0
    %455 = vmatprep.subr.mxu0 0.0
    %456 = vmatpush1.msra.mxu0 0.0
    %457 = vmatprep.subr.mxu0 0.0
    %458 = vmatpush1.msra.mxu0 0.0
    %459 = vmatprep.subr.mxu0 0.0
    %460 = vmatpush1.msra.mxu0 0.0
    %461 = vmatprep.subr.mxu0 0.0
    %462 = vmatpush1.msra.mxu0 0.0
    %463 = vmatprep.subr.mxu0 0.0
    %464 = vmatpush1.msra.mxu0 0.0
    %465 = vmatprep.subr.mxu0 0.0
    %466 = vmatpush1.msra.mxu0 0.0
    %467 = vmatprep.subr.mxu0 0.0
    %468 = vmatpush1.msra.mxu0 0.0
    %469 = vmatprep.subr.mxu0 0.0
    %470 = vmatpush1.msra.mxu0 0.0
    %471 = vmatprep.subr.mxu0 0.0
    %472 = vmatpush1.msra.mxu0 0.0
    %473 = vmatprep.subr.mxu0 0.0
    %474 = vmatpush1.msra.mxu0 0.0
    %475 = vmatprep.subr.mxu0 0.0
    %476 = vmatpush1.msra.mxu0 0.0
    %477 = vmatprep.subr.mxu0 0.0
    %478 = vmatpush1.msra.mxu0 0.0
    %479 = vmatprep.subr.mxu0 0.0
    %480 = vmatpush1.msra.mxu0 0.0
    %481 = vmatprep.subr.mxu0 0.0
    %482 = vmatpush1.msra.mxu0 0.0
    %483 = vmatprep.subr.mxu0 0.0
    %484 = vmatpush1.msra.mxu0 0.0
    %485 = vmatprep.subr.mxu0 0.0
    %486 = vmatpush1.msra.mxu0 0.0
    %487 = vmatprep.subr.mxu0 0.0
    %488 = vmatpush1.msra.mxu0 0.0
    %489 = vmatprep.subr.mxu0 0.0
    %490 = vmatpush1.msra.mxu0 0.0
    %491 = vmatprep.subr.mxu0 0.0
    %492 = vmatpush1.msra.mxu0 0.0
    %493 = vmatprep.subr.mxu0 0.0
    %494 = vmatpush1.msra.mxu0 0.0
    %495 = vmatprep.subr.mxu0 0.0
    %496 = vmatpush1.msra.mxu0 0.0
    %497 = vmatprep.mubr.f32.mxu0 0.0
    %498 = vmatmul.mubr.f32.gmra.mrb[0].mxu0 %v431
    %v499 = vpop.f32.mrb[0].mxu0
    %v500 = vadd.f32 0.0, %v499
    %v501 = vpop.f32.mrb[0].mxu0
    %502 = vdwg.mxu0
    %503 = vrot.lane.b32.xlu0 %v170, 120
    %v504 = vpop.permute.xlu0 %503
    %505 = vrot.lane.b32.xlu0 %v156, 88
    %v506 = vpop.permute.xlu0 %505
    %v507 = vsel %vm175, %v504, 0
    %v509 = vsel %vm175, %v506, 0
    %511 = vmatprep.subr.mxu0 0.0
    %512 = vmatpush1.xpose.msra.mxu0 %v509
    %513 = vmatprep.subr.mxu0 0.0
    %514 = vmatpush1.xpose.msra.mxu0 0.0
    %515 = vmatprep.subr.mxu0 0.0
    %516 = vmatpush1.xpose.msra.mxu0 0.0
    %517 = vmatprep.subr.mxu0 0.0
    %518 = vmatpush1.xpose.msra.mxu0 0.0
    %519 = vmatprep.subr.mxu0 0.0
    %520 = vmatpush1.xpose.msra.mxu0 0.0
    %521 = vmatprep.subr.mxu0 0.0
    %522 = vmatpush1.xpose.msra.mxu0 0.0
    %523 = vmatprep.subr.mxu0 0.0
    %524 = vmatpush1.xpose.msra.mxu0 0.0
    %525 = vmatprep.subr.mxu0 0.0
    %526 = vmatpush1.xpose.msra.mxu0 0.0
    %527 = vmatprep.subr.mxu0 0.0
    %528 = vmatpush1.xpose.msra.mxu0 0.0
    %529 = vmatprep.subr.mxu0 0.0
    %530 = vmatpush1.xpose.msra.mxu0 0.0
    %531 = vmatprep.subr.mxu0 0.0
    %532 = vmatpush1.xpose.msra.mxu0 0.0
    %533 = vmatprep.subr.mxu0 0.0
    %534 = vmatpush1.xpose.msra.mxu0 0.0
    %535 = vmatprep.subr.mxu0 0.0
    %536 = vmatpush1.xpose.msra.mxu0 0.0
    %537 = vmatprep.subr.mxu0 0.0
    %538 = vmatpush1.xpose.msra.mxu0 0.0
    %539 = vmatprep.subr.mxu0 0.0
    %540 = vmatpush1.xpose.msra.mxu0 0.0
    %541 = vmatprep.subr.mxu0 0.0
    %542 = vmatpush1.xpose.msra.mxu0 0.0
    %543 = vmatprep.subr.mxu0 0.0
    %544 = vmatpush1.xpose.msra.mxu0 0.0
    %545 = vmatprep.subr.mxu0 0.0
    %546 = vmatpush1.xpose.msra.mxu0 0.0
    %547 = vmatprep.subr.mxu0 0.0
    %548 = vmatpush1.xpose.msra.mxu0 0.0
    %549 = vmatprep.subr.mxu0 0.0
    %550 = vmatpush1.xpose.msra.mxu0 0.0
    %551 = vmatprep.subr.mxu0 0.0
    %552 = vmatpush1.xpose.msra.mxu0 0.0
    %553 = vmatprep.subr.mxu0 0.0
    %554 = vmatpush1.xpose.msra.mxu0 0.0
    %555 = vmatprep.subr.mxu0 0.0
    %556 = vmatpush1.xpose.msra.mxu0 0.0
    %557 = vmatprep.subr.mxu0 0.0
    %558 = vmatpush1.xpose.msra.mxu0 0.0
    %559 = vmatprep.subr.mxu0 0.0
    %560 = vmatpush1.xpose.msra.mxu0 0.0
    %561 = vmatprep.subr.mxu0 0.0
    %562 = vmatpush1.xpose.msra.mxu0 0.0
    %563 = vmatprep.subr.mxu0 0.0
    %564 = vmatpush1.xpose.msra.mxu0 0.0
    %565 = vmatprep.subr.mxu0 0.0
    %566 = vmatpush1.xpose.msra.mxu0 0.0
    %567 = vmatprep.subr.mxu0 0.0
    %568 = vmatpush1.xpose.msra.mxu0 0.0
    %569 = vmatprep.subr.mxu0 0.0
    %570 = vmatpush1.xpose.msra.mxu0 0.0
    %571 = vmatprep.subr.mxu0 0.0
    %572 = vmatpush1.xpose.msra.mxu0 0.0
    %573 = vmatprep.subr.mxu0 0.0
    %574 = vmatpush1.xpose.msra.mxu0 0.0
    %575 = vmatprep.mubr.f32.mxu0 0.0
    %576 = vmatmul.mubr.f32.gmra.mrb[0].mxu0 %v507
    %v577 = vpop.f32.mrb[0].mxu0
    %v578 = vadd.f32 %v169, %v577
    %v579 = vpop.f32.mrb[0].mxu0
    %580 = vdwg.mxu0
    %581 = vrot.lane.b32.xlu0 %v171, 120
    %v582 = vpop.permute.xlu0 %581
    %583 = vrot.lane.b32.xlu0 %v161, 88
    %v584 = vpop.permute.xlu0 %583
    %v585 = vsel %vm175, %v582, 0
    %v587 = vsel %vm175, %v584, 0
    %589 = vmatprep.subr.mxu0 0.0
    %590 = vmatpush1.xpose.msra.mxu0 %v587
    %591 = vmatprep.subr.mxu0 0.0
    %592 = vmatpush1.xpose.msra.mxu0 0.0
    %593 = vmatprep.subr.mxu0 0.0
    %594 = vmatpush1.xpose.msra.mxu0 0.0
    %595 = vmatprep.subr.mxu0 0.0
    %596 = vmatpush1.xpose.msra.mxu0 0.0
    %597 = vmatprep.subr.mxu0 0.0
    %598 = vmatpush1.xpose.msra.mxu0 0.0
    %599 = vmatprep.subr.mxu0 0.0
    %600 = vmatpush1.xpose.msra.mxu0 0.0
    %601 = vmatprep.subr.mxu0 0.0
    %602 = vmatpush1.xpose.msra.mxu0 0.0
    %603 = vmatprep.subr.mxu0 0.0
    %604 = vmatpush1.xpose.msra.mxu0 0.0
    %605 = vmatprep.subr.mxu0 0.0
    %606 = vmatpush1.xpose.msra.mxu0 0.0
    %607 = vmatprep.subr.mxu0 0.0
    %608 = vmatpush1.xpose.msra.mxu0 0.0
    %609 = vmatprep.subr.mxu0 0.0
    %610 = vmatpush1.xpose.msra.mxu0 0.0
    %611 = vmatprep.subr.mxu0 0.0
    %612 = vmatpush1.xpose.msra.mxu0 0.0
    %613 = vmatprep.subr.mxu0 0.0
    %614 = vmatpush1.xpose.msra.mxu0 0.0
    %615 = vmatprep.subr.mxu0 0.0
    %616 = vmatpush1.xpose.msra.mxu0 0.0
    %617 = vmatprep.subr.mxu0 0.0
    %618 = vmatpush1.xpose.msra.mxu0 0.0
    %619 = vmatprep.subr.mxu0 0.0
    %620 = vmatpush1.xpose.msra.mxu0 0.0
    %621 = vmatprep.subr.mxu0 0.0
    %622 = vmatpush1.xpose.msra.mxu0 0.0
    %623 = vmatprep.subr.mxu0 0.0
    %624 = vmatpush1.xpose.msra.mxu0 0.0
    %625 = vmatprep.subr.mxu0 0.0
    %626 = vmatpush1.xpose.msra.mxu0 0.0
    %627 = vmatprep.subr.mxu0 0.0
    %628 = vmatpush1.xpose.msra.mxu0 0.0
    %629 = vmatprep.subr.mxu0 0.0
    %630 = vmatpush1.xpose.msra.mxu0 0.0
    %631 = vmatprep.subr.mxu0 0.0
    %632 = vmatpush1.xpose.msra.mxu0 0.0
    %633 = vmatprep.subr.mxu0 0.0
    %634 = vmatpush1.xpose.msra.mxu0 0.0
    %635 = vmatprep.subr.mxu0 0.0
    %636 = vmatpush1.xpose.msra.mxu0 0.0
    %637 = vmatprep.subr.mxu0 0.0
    %638 = vmatpush1.xpose.msra.mxu0 0.0
    %639 = vmatprep.subr.mxu0 0.0
    %640 = vmatpush1.xpose.msra.mxu0 0.0
    %641 = vmatprep.subr.mxu0 0.0
    %642 = vmatpush1.xpose.msra.mxu0 0.0
    %643 = vmatprep.subr.mxu0 0.0
    %644 = vmatpush1.xpose.msra.mxu0 0.0
    %645 = vmatprep.subr.mxu0 0.0
    %646 = vmatpush1.xpose.msra.mxu0 0.0
    %647 = vmatprep.subr.mxu0 0.0
    %648 = vmatpush1.xpose.msra.mxu0 0.0
    %649 = vmatprep.subr.mxu0 0.0
    %650 = vmatpush1.xpose.msra.mxu0 0.0
    %651 = vmatprep.subr.mxu0 0.0
    %652 = vmatpush1.xpose.msra.mxu0 0.0
    %653 = vmatprep.mubr.f32.mxu0 0.0
    %654 = vmatmul.mubr.f32.gmra.mrb[0].mxu0 %v585
    %v655 = vpop.f32.mrb[0].mxu0
    %v656 = vadd.f32 %v169, %v655
    %v657 = vpop.f32.mrb[0].mxu0
    %658 = vdwg.mxu0
    %v659 = vsel %vm175, %v578, -inf
    %660 = vmax.xlane.f32.xlu0 %v659
    %v661 = vpop.xlane.xlu0 %660
    %v662 = vsel %vm175, %v656, -inf
    %663 = vmax.xlane.f32.xlu0 %v662
    %v664 = vpop.xlane.xlu0 %663
    %v665 = vsub.f32 %v578, %v661
    %v666 = vsub.f32 %v656, %v664
    %v667 = vmul.f32 %v665, 1.442695
    %v668 = vpow.pop %v667
    %v669 = vmul.f32 %v666, 1.442695
    %v670 = vpow.pop %v669
    %v671 = vsel %vm175, %v668, 0.0
    %672 = vadd.xlane.f32.xlu0 %v671
    %v673 = vpop.xlane.xlu0 %672
    %v674 = vsel %vm175, %v670, 0.0
    %675 = vadd.xlane.f32.xlu0 %v674
    %v676 = vpop.xlane.xlu0 %675
    %v677 = vrcp.pop %v673
    %v678 = vrcp.pop %v676
    %v679 = vmul.f32 %v668, %v677
    %v680 = vmul.f32 %v670, %v678
    %681 = vrot.lane.b32.xlu0 %v156, 56
    %v682 = vpop.permute.xlu0 %681
    %v685 = vsel %vm175, %v679, 0
    %687 = vmatprep.subr.mxu0 0.0
    %688 = vmatpush1.msra.mxu0 %v682
    %689 = vmatprep.subr.mxu0 0.0
    %690 = vmatpush1.msra.mxu0 0.0
    %691 = vmatprep.subr.mxu0 0.0
    %692 = vmatpush1.msra.mxu0 0.0
    %693 = vmatprep.subr.mxu0 0.0
    %694 = vmatpush1.msra.mxu0 0.0
    %695 = vmatprep.subr.mxu0 0.0
    %696 = vmatpush1.msra.mxu0 0.0
    %697 = vmatprep.subr.mxu0 0.0
    %698 = vmatpush1.msra.mxu0 0.0
    %699 = vmatprep.subr.mxu0 0.0
    %700 = vmatpush1.msra.mxu0 0.0
    %701 = vmatprep.subr.mxu0 0.0
    %702 = vmatpush1.msra.mxu0 0.0
    %703 = vmatprep.subr.mxu0 0.0
    %704 = vmatpush1.msra.mxu0 0.0
    %705 = vmatprep.subr.mxu0 0.0
    %706 = vmatpush1.msra.mxu0 0.0
    %707 = vmatprep.subr.mxu0 0.0
    %708 = vmatpush1.msra.mxu0 0.0
    %709 = vmatprep.subr.mxu0 0.0
    %710 = vmatpush1.msra.mxu0 0.0
    %711 = vmatprep.subr.mxu0 0.0
    %712 = vmatpush1.msra.mxu0 0.0
    %713 = vmatprep.subr.mxu0 0.0
    %714 = vmatpush1.msra.mxu0 0.0
    %715 = vmatprep.subr.mxu0 0.0
    %716 = vmatpush1.msra.mxu0 0.0
    %717 = vmatprep.subr.mxu0 0.0
    %718 = vmatpush1.msra.mxu0 0.0
    %719 = vmatprep.subr.mxu0 0.0
    %720 = vmatpush1.msra.mxu0 0.0
    %721 = vmatprep.subr.mxu0 0.0
    %722 = vmatpush1.msra.mxu0 0.0
    %723 = vmatprep.subr.mxu0 0.0
    %724 = vmatpush1.msra.mxu0 0.0
    %725 = vmatprep.subr.mxu0 0.0
    %726 = vmatpush1.msra.mxu0 0.0
    %727 = vmatprep.subr.mxu0 0.0
    %728 = vmatpush1.msra.mxu0 0.0
    %729 = vmatprep.subr.mxu0 0.0
    %730 = vmatpush1.msra.mxu0 0.0
    %731 = vmatprep.subr.mxu0 0.0
    %732 = vmatpush1.msra.mxu0 0.0
    %733 = vmatprep.subr.mxu0 0.0
    %734 = vmatpush1.msra.mxu0 0.0
    %735 = vmatprep.subr.mxu0 0.0
    %736 = vmatpush1.msra.mxu0 0.0
    %737 = vmatprep.subr.mxu0 0.0
    %738 = vmatpush1.msra.mxu0 0.0
    %739 = vmatprep.subr.mxu0 0.0
    %740 = vmatpush1.msra.mxu0 0.0
    %741 = vmatprep.subr.mxu0 0.0
    %742 = vmatpush1.msra.mxu0 0.0
    %743 = vmatprep.subr.mxu0 0.0
    %744 = vmatpush1.msra.mxu0 0.0
    %745 = vmatprep.subr.mxu0 0.0
    %746 = vmatpush1.msra.mxu0 0.0
    %747 = vmatprep.subr.mxu0 0.0
    %748 = vmatpush1.msra.mxu0 0.0
    %749 = vmatprep.subr.mxu0 0.0
    %750 = vmatpush1.msra.mxu0 0.0
    %751 = vmatprep.mubr.f32.mxu0 0.0
    %752 = vmatmul.mubr.f32.gmra.mrb[0].mxu0 %v685
    %v753 = vpop.f32.mrb[0].mxu0
    %v754 = vadd.f32 0.0, %v753
    %v755 = vpop.f32.mrb[0].mxu0
    %756 = vdwg.mxu0
    %757 = vrot.lane.b32.xlu0 %v161, 56
    %v758 = vpop.permute.xlu0 %757
    %v761 = vsel %vm175, %v680, 0
    %763 = vmatprep.subr.mxu0 0.0
    %764 = vmatpush1.msra.mxu0 %v758
    %765 = vmatprep.subr.mxu0 0.0
    %766 = vmatpush1.msra.mxu0 0.0
    %767 = vmatprep.subr.mxu0 0.0
    %768 = vmatpush1.msra.mxu0 0.0
    %769 = vmatprep.subr.mxu0 0.0
    %770 = vmatpush1.msra.mxu0 0.0
    %771 = vmatprep.subr.mxu0 0.0
    %772 = vmatpush1.msra.mxu0 0.0
    %773 = vmatprep.subr.mxu0 0.0
    %774 = vmatpush1.msra.mxu0 0.0
    %775 = vmatprep.subr.mxu0 0.0
    %776 = vmatpush1.msra.mxu0 0.0
    %777 = vmatprep.subr.mxu0 0.0
    %778 = vmatpush1.msra.mxu0 0.0
    %779 = vmatprep.subr.mxu0 0.0
    %780 = vmatpush1.msra.mxu0 0.0
    %781 = vmatprep.subr.mxu0 0.0
    %782 = vmatpush1.msra.mxu0 0.0
    %783 = vmatprep.subr.mxu0 0.0
    %784 = vmatpush1.msra.mxu0 0.0
    %785 = vmatprep.subr.mxu0 0.0
    %786 = vmatpush1.msra.mxu0 0.0
    %787 = vmatprep.subr.mxu0 0.0
    %788 = vmatpush1.msra.mxu0 0.0
    %789 = vmatprep.subr.mxu0 0.0
    %790 = vmatpush1.msra.mxu0 0.0
    %791 = vmatprep.subr.mxu0 0.0
    %792 = vmatpush1.msra.mxu0 0.0
    %793 = vmatprep.subr.mxu0 0.0
    %794 = vmatpush1.msra.mxu0 0.0
    %795 = vmatprep.subr.mxu0 0.0
    %796 = vmatpush1.msra.mxu0 0.0
    %797 = vmatprep.subr.mxu0 0.0
    %798 = vmatpush1.msra.mxu0 0.0
    %799 = vmatprep.subr.mxu0 0.0
    %800 = vmatpush1.msra.mxu0 0.0
    %801 = vmatprep.subr.mxu0 0.0
    %802 = vmatpush1.msra.mxu0 0.0
    %803 = vmatprep.subr.mxu0 0.0
    %804 = vmatpush1.msra.mxu0 0.0
    %805 = vmatprep.subr.mxu0 0.0
    %806 = vmatpush1.msra.mxu0 0.0
    %807 = vmatprep.subr.mxu0 0.0
    %808 = vmatpush1.msra.mxu0 0.0
    %809 = vmatprep.subr.mxu0 0.0
    %810 = vmatpush1.msra.mxu0 0.0
    %811 = vmatprep.subr.mxu0 0.0
    %812 = vmatpush1.msra.mxu0 0.0
    %813 = vmatprep.subr.mxu0 0.0
    %814 = vmatpush1.msra.mxu0 0.0
    %815 = vmatprep.subr.mxu0 0.0
    %816 = vmatpush1.msra.mxu0 0.0
    %817 = vmatprep.subr.mxu0 0.0
    %818 = vmatpush1.msra.mxu0 0.0
    %819 = vmatprep.subr.mxu0 0.0
    %820 = vmatpush1.msra.mxu0 0.0
    %821 = vmatprep.subr.mxu0 0.0
    %822 = vmatpush1.msra.mxu0 0.0
    %823 = vmatprep.subr.mxu0 0.0
    %824 = vmatpush1.msra.mxu0 0.0
    %825 = vmatprep.subr.mxu0 0.0
    %826 = vmatpush1.msra.mxu0 0.0
    %827 = vmatprep.mubr.f32.mxu0 0.0
    %828 = vmatmul.mubr.f32.gmra.mrb[0].mxu0 %v761
    %v829 = vpop.f32.mrb[0].mxu0
    %v830 = vadd.f32 0.0, %v829
    %v831 = vpop.f32.mrb[0].mxu0
    %832 = vdwg.mxu0
    %833 = vrot.lane.b32.xlu0 %v170, 112
    %v834 = vpop.permute.xlu0 %833
    %835 = vrot.lane.b32.xlu0 %v156, 80
    %v836 = vpop.permute.xlu0 %835
    %v837 = vsel %vm175, %v834, 0
    %v839 = vsel %vm175, %v836, 0
    %841 = vmatprep.subr.mxu0 0.0
    %842 = vmatpush1.xpose.msra.mxu0 %v839
    %843 = vmatprep.subr.mxu0 0.0
    %844 = vmatpush1.xpose.msra.mxu0 0.0
    %845 = vmatprep.subr.mxu0 0.0
    %846 = vmatpush1.xpose.msra.mxu0 0.0
    %847 = vmatprep.subr.mxu0 0.0
    %848 = vmatpush1.xpose.msra.mxu0 0.0
    %849 = vmatprep.subr.mxu0 0.0
    %850 = vmatpush1.xpose.msra.mxu0 0.0
    %851 = vmatprep.subr.mxu0 0.0
    %852 = vmatpush1.xpose.msra.mxu0 0.0
    %853 = vmatprep.subr.mxu0 0.0
    %854 = vmatpush1.xpose.msra.mxu0 0.0
    %855 = vmatprep.subr.mxu0 0.0
    %856 = vmatpush1.xpose.msra.mxu0 0.0
    %857 = vmatprep.subr.mxu0 0.0
    %858 = vmatpush1.xpose.msra.mxu0 0.0
    %859 = vmatprep.subr.mxu0 0.0
    %860 = vmatpush1.xpose.msra.mxu0 0.0
    %861 = vmatprep.subr.mxu0 0.0
    %862 = vmatpush1.xpose.msra.mxu0 0.0
    %863 = vmatprep.subr.mxu0 0.0
    %864 = vmatpush1.xpose.msra.mxu0 0.0
    %865 = vmatprep.subr.mxu0 0.0
    %866 = vmatpush1.xpose.msra.mxu0 0.0
    %867 = vmatprep.subr.mxu0 0.0
    %868 = vmatpush1.xpose.msra.mxu0 0.0
    %869 = vmatprep.subr.mxu0 0.0
    %870 = vmatpush1.xpose.msra.mxu0 0.0
    %871 = vmatprep.subr.mxu0 0.0
    %872 = vmatpush1.xpose.msra.mxu0 0.0
    %873 = vmatprep.subr.mxu0 0.0
    %874 = vmatpush1.xpose.msra.mxu0 0.0
    %875 = vmatprep.subr.mxu0 0.0
    %876 = vmatpush1.xpose.msra.mxu0 0.0
    %877 = vmatprep.subr.mxu0 0.0
    %878 = vmatpush1.xpose.msra.mxu0 0.0
    %879 = vmatprep.subr.mxu0 0.0
    %880 = vmatpush1.xpose.msra.mxu0 0.0
    %881 = vmatprep.subr.mxu0 0.0
    %882 = vmatpush1.xpose.msra.mxu0 0.0
    %883 = vmatprep.subr.mxu0 0.0
    %884 = vmatpush1.xpose.msra.mxu0 0.0
    %885 = vmatprep.subr.mxu0 0.0
    %886 = vmatpush1.xpose.msra.mxu0 0.0
    %887 = vmatprep.subr.mxu0 0.0
    %888 = vmatpush1.xpose.msra.mxu0 0.0
    %889 = vmatprep.subr.mxu0 0.0
    %890 = vmatpush1.xpose.msra.mxu0 0.0
    %891 = vmatprep.subr.mxu0 0.0
    %892 = vmatpush1.xpose.msra.mxu0 0.0
    %893 = vmatprep.subr.mxu0 0.0
    %894 = vmatpush1.xpose.msra.mxu0 0.0
    %895 = vmatprep.subr.mxu0 0.0
    %896 = vmatpush1.xpose.msra.mxu0 0.0
    %897 = vmatprep.subr.mxu0 0.0
    %898 = vmatpush1.xpose.msra.mxu0 0.0
    %899 = vmatprep.subr.mxu0 0.0
    %900 = vmatpush1.xpose.msra.mxu0 0.0
    %901 = vmatprep.subr.mxu0 0.0
    %902 = vmatpush1.xpose.msra.mxu0 0.0
    %903 = vmatprep.subr.mxu0 0.0
    %904 = vmatpush1.xpose.msra.mxu0 0.0
    %905 = vmatprep.mubr.f32.mxu0 0.0
    %906 = vmatmul.mubr.f32.gmra.mrb[0].mxu0 %v837
    %v907 = vpop.f32.mrb[0].mxu0
    %v908 = vadd.f32 %v169, %v907
    %v909 = vpop.f32.mrb[0].mxu0
    %910 = vdwg.mxu0
    %911 = vrot.lane.b32.xlu0 %v171, 112
    %v912 = vpop.permute.xlu0 %911
    %913 = vrot.lane.b32.xlu0 %v161, 80
    %v914 = vpop.permute.xlu0 %913
    %v915 = vsel %vm175, %v912, 0
    %v917 = vsel %vm175, %v914, 0
    %919 = vmatprep.subr.mxu0 0.0
    %920 = vmatpush1.xpose.msra.mxu0 %v917
    %921 = vmatprep.subr.mxu0 0.0
    %922 = vmatpush1.xpose.msra.mxu0 0.0
    %923 = vmatprep.subr.mxu0 0.0
    %924 = vmatpush1.xpose.msra.mxu0 0.0
    %925 = vmatprep.subr.mxu0 0.0
    %926 = vmatpush1.xpose.msra.mxu0 0.0
    %927 = vmatprep.subr.mxu0 0.0
    %928 = vmatpush1.xpose.msra.mxu0 0.0
    %929 = vmatprep.subr.mxu0 0.0
    %930 = vmatpush1.xpose.msra.mxu0 0.0
    %931 = vmatprep.subr.mxu0 0.0
    %932 = vmatpush1.xpose.msra.mxu0 0.0
    %933 = vmatprep.subr.mxu0 0.0
    %934 = vmatpush1.xpose.msra.mxu0 0.0
    %935 = vmatprep.subr.mxu0 0.0
    %936 = vmatpush1.xpose.msra.mxu0 0.0
    %937 = vmatprep.subr.mxu0 0.0
    %938 = vmatpush1.xpose.msra.mxu0 0.0
    %939 = vmatprep.subr.mxu0 0.0
    %940 = vmatpush1.xpose.msra.mxu0 0.0
    %941 = vmatprep.subr.mxu0 0.0
    %942 = vmatpush1.xpose.msra.mxu0 0.0
    %943 = vmatprep.subr.mxu0 0.0
    %944 = vmatpush1.xpose.msra.mxu0 0.0
    %945 = vmatprep.subr.mxu0 0.0
    %946 = vmatpush1.xpose.msra.mxu0 0.0
    %947 = vmatprep.subr.mxu0 0.0
    %948 = vmatpush1.xpose.msra.mxu0 0.0
    %949 = vmatprep.subr.mxu0 0.0
    %950 = vmatpush1.xpose.msra.mxu0 0.0
    %951 = vmatprep.subr.mxu0 0.0
    %952 = vmatpush1.xpose.msra.mxu0 0.0
    %953 = vmatprep.subr.mxu0 0.0
    %954 = vmatpush1.xpose.msra.mxu0 0.0
    %955 = vmatprep.subr.mxu0 0.0
    %956 = vmatpush1.xpose.msra.mxu0 0.0
    %957 = vmatprep.subr.mxu0 0.0
    %958 = vmatpush1.xpose.msra.mxu0 0.0
    %959 = vmatprep.subr.mxu0 0.0
    %960 = vmatpush1.xpose.msra.mxu0 0.0
    %961 = vmatprep.subr.mxu0 0.0
    %962 = vmatpush1.xpose.msra.mxu0 0.0
    %963 = vmatprep.subr.mxu0 0.0
    %964 = vmatpush1.xpose.msra.mxu0 0.0
    %965 = vmatprep.subr.mxu0 0.0
    %966 = vmatpush1.xpose.msra.mxu0 0.0
    %967 = vmatprep.subr.mxu0 0.0
    %968 = vmatpush1.xpose.msra.mxu0 0.0
    %969 = vmatprep.subr.mxu0 0.0
    %970 = vmatpush1.xpose.msra.mxu0 0.0
    %971 = vmatprep.subr.mxu0 0.0
    %972 = vmatpush1.xpose.msra.mxu0 0.0
    %973 = vmatprep.subr.mxu0 0.0
    %974 = vmatpush1.xpose.msra.mxu0 0.0
    %975 = vmatprep.subr.mxu0 0.0
    %976 = vmatpush1.xpose.msra.mxu0 0.0
    %977 = vmatprep.subr.mxu0 0.0
    %978 = vmatpush1.xpose.msra.mxu0 0.0
    %979 = vmatprep.subr.mxu0 0.0
    %980 = vmatpush1.xpose.msra.mxu0 0.0
    %981 = vmatprep.subr.mxu0 0.0
    %982 = vmatpush1.xpose.msra.mxu0 0.0
    %983 = vmatprep.mubr.f32.mxu0 0.0
    %984 = vmatmul.mubr.f32.gmra.mrb[0].mxu0 %v915
    %v985 = vpop.f32.mrb[0].mxu0
    %v986 = vadd.f32 %v169, %v985
    %v987 = vpop.f32.mrb[0].mxu0
    %988 = vdwg.mxu0
    %v989 = vsel %vm175, %v908, -inf
    %990 = vmax.xlane.f32.xlu0 %v989
    %v991 = vpop.xlane.xlu0 %990
    %v992 = vsel %vm175, %v986, -inf
    %993 = vmax.xlane.f32.xlu0 %v992
    %v994 = vpop.xlane.xlu0 %993
    %v995 = vsub.f32 %v908, %v991
    %v996 = vsub.f32 %v986, %v994
    %v997 = vmul.f32 %v995, 1.442695
    %v998 = vpow.pop %v997
    %v999 = vmul.f32 %v996, 1.442695
    %v1000 = vpow.pop %v999
    %v1001 = vsel %vm175, %v998, 0.0
    %1002 = vadd.xlane.f32.xlu0 %v1001
    %v1003 = vpop.xlane.xlu0 %1002
    %v1004 = vsel %vm175, %v1000, 0.0
    %1005 = vadd.xlane.f32.xlu0 %v1004
    %v1006 = vpop.xlane.xlu0 %1005
    %v1007 = vrcp.pop %v1003
    %v1008 = vrcp.pop %v1006
    %v1009 = vmul.f32 %v998, %v1007
    %v1010 = vmul.f32 %v1000, %v1008
    %1011 = vrot.lane.b32.xlu0 %v156, 48
    %v1012 = vpop.permute.xlu0 %1011
    %v1015 = vsel %vm175, %v1009, 0
    %1017 = vmatprep.subr.mxu0 0.0
    %1018 = vmatpush1.msra.mxu0 %v1012
    %1019 = vmatprep.subr.mxu0 0.0
    %1020 = vmatpush1.msra.mxu0 0.0
    %1021 = vmatprep.subr.mxu0 0.0
    %1022 = vmatpush1.msra.mxu0 0.0
    %1023 = vmatprep.subr.mxu0 0.0
    %1024 = vmatpush1.msra.mxu0 0.0
    %1025 = vmatprep.subr.mxu0 0.0
    %1026 = vmatpush1.msra.mxu0 0.0
    %1027 = vmatprep.subr.mxu0 0.0
    %1028 = vmatpush1.msra.mxu0 0.0
    %1029 = vmatprep.subr.mxu0 0.0
    %1030 = vmatpush1.msra.mxu0 0.0
    %1031 = vmatprep.subr.mxu0 0.0
    %1032 = vmatpush1.msra.mxu0 0.0
    %1033 = vmatprep.subr.mxu0 0.0
    %1034 = vmatpush1.msra.mxu0 0.0
    %1035 = vmatprep.subr.mxu0 0.0
    %1036 = vmatpush1.msra.mxu0 0.0
    %1037 = vmatprep.subr.mxu0 0.0
    %1038 = vmatpush1.msra.mxu0 0.0
    %1039 = vmatprep.subr.mxu0 0.0
    %1040 = vmatpush1.msra.mxu0 0.0
    %1041 = vmatprep.subr.mxu0 0.0
    %1042 = vmatpush1.msra.mxu0 0.0
    %1043 = vmatprep.subr.mxu0 0.0
    %1044 = vmatpush1.msra.mxu0 0.0
    %1045 = vmatprep.subr.mxu0 0.0
    %1046 = vmatpush1.msra.mxu0 0.0
    %1047 = vmatprep.subr.mxu0 0.0
    %1048 = vmatpush1.msra.mxu0 0.0
    %1049 = vmatprep.subr.mxu0 0.0
    %1050 = vmatpush1.msra.mxu0 0.0
    %1051 = vmatprep.subr.mxu0 0.0
    %1052 = vmatpush1.msra.mxu0 0.0
    %1053 = vmatprep.subr.mxu0 0.0
    %1054 = vmatpush1.msra.mxu0 0.0
    %1055 = vmatprep.subr.mxu0 0.0
    %1056 = vmatpush1.msra.mxu0 0.0
    %1057 = vmatprep.subr.mxu0 0.0
    %1058 = vmatpush1.msra.mxu0 0.0
    %1059 = vmatprep.subr.mxu0 0.0
    %1060 = vmatpush1.msra.mxu0 0.0
    %1061 = vmatprep.subr.mxu0 0.0
    %1062 = vmatpush1.msra.mxu0 0.0
    %1063 = vmatprep.subr.mxu0 0.0
    %1064 = vmatpush1.msra.mxu0 0.0
    %1065 = vmatprep.subr.mxu0 0.0
    %1066 = vmatpush1.msra.mxu0 0.0
    %1067 = vmatprep.subr.mxu0 0.0
    %1068 = vmatpush1.msra.mxu0 0.0
    %1069 = vmatprep.subr.mxu0 0.0
    %1070 = vmatpush1.msra.mxu0 0.0
    %1071 = vmatprep.subr.mxu0 0.0
    %1072 = vmatpush1.msra.mxu0 0.0
    %1073 = vmatprep.subr.mxu0 0.0
    %1074 = vmatpush1.msra.mxu0 0.0
    %1075 = vmatprep.subr.mxu0 0.0
    %1076 = vmatpush1.msra.mxu0 0.0
    %1077 = vmatprep.subr.mxu0 0.0
    %1078 = vmatpush1.msra.mxu0 0.0
    %1079 = vmatprep.subr.mxu0 0.0
    %1080 = vmatpush1.msra.mxu0 0.0
    %1081 = vmatprep.mubr.f32.mxu0 0.0
    %1082 = vmatmul.mubr.f32.gmra.mrb[0].mxu0 %v1015
    %v1083 = vpop.f32.mrb[0].mxu0
    %v1084 = vadd.f32 0.0, %v1083
    %v1085 = vpop.f32.mrb[0].mxu0
    %1086 = vdwg.mxu0
    %1087 = vrot.lane.b32.xlu0 %v161, 48
    %v1088 = vpop.permute.xlu0 %1087
    %v1091 = vsel %vm175, %v1010, 0
    %1093 = vmatprep.subr.mxu0 0.0
    %1094 = vmatpush1.msra.mxu0 %v1088
    %1095 = vmatprep.subr.mxu0 0.0
    %1096 = vmatpush1.msra.mxu0 0.0
    %1097 = vmatprep.subr.mxu0 0.0
    %1098 = vmatpush1.msra.mxu0 0.0
    %1099 = vmatprep.subr.mxu0 0.0
    %1100 = vmatpush1.msra.mxu0 0.0
    %1101 = vmatprep.subr.mxu0 0.0
    %1102 = vmatpush1.msra.mxu0 0.0
    %1103 = vmatprep.subr.mxu0 0.0
    %1104 = vmatpush1.msra.mxu0 0.0
    %1105 = vmatprep.subr.mxu0 0.0
    %1106 = vmatpush1.msra.mxu0 0.0
    %1107 = vmatprep.subr.mxu0 0.0
    %1108 = vmatpush1.msra.mxu0 0.0
    %1109 = vmatprep.subr.mxu0 0.0
    %1110 = vmatpush1.msra.mxu0 0.0
    %1111 = vmatprep.subr.mxu0 0.0
    %1112 = vmatpush1.msra.mxu0 0.0
    %1113 = vmatprep.subr.mxu0 0.0
    %1114 = vmatpush1.msra.mxu0 0.0
    %1115 = vmatprep.subr.mxu0 0.0
    %1116 = vmatpush1.msra.mxu0 0.0
    %1117 = vmatprep.subr.mxu0 0.0
    %1118 = vmatpush1.msra.mxu0 0.0
    %1119 = vmatprep.subr.mxu0 0.0
    %1120 = vmatpush1.msra.mxu0 0.0
    %1121 = vmatprep.subr.mxu0 0.0
    %1122 = vmatpush1.msra.mxu0 0.0
    %1123 = vmatprep.subr.mxu0 0.0
    %1124 = vmatpush1.msra.mxu0 0.0
    %1125 = vmatprep.subr.mxu0 0.0
    %1126 = vmatpush1.msra.mxu0 0.0
    %1127 = vmatprep.subr.mxu0 0.0
    %1128 = vmatpush1.msra.mxu0 0.0
    %1129 = vmatprep.subr.mxu0 0.0
    %1130 = vmatpush1.msra.mxu0 0.0
    %1131 = vmatprep.subr.mxu0 0.0
    %1132 = vmatpush1.msra.mxu0 0.0
    %1133 = vmatprep.subr.mxu0 0.0
    %1134 = vmatpush1.msra.mxu0 0.0
    %1135 = vmatprep.subr.mxu0 0.0
    %1136 = vmatpush1.msra.mxu0 0.0
    %1137 = vmatprep.subr.mxu0 0.0
    %1138 = vmatpush1.msra.mxu0 0.0
    %1139 = vmatprep.subr.mxu0 0.0
    %1140 = vmatpush1.msra.mxu0 0.0
    %1141 = vmatprep.subr.mxu0 0.0
    %1142 = vmatpush1.msra.mxu0 0.0
    %1143 = vmatprep.subr.mxu0 0.0
    %1144 = vmatpush1.msra.mxu0 0.0
    %1145 = vmatprep.subr.mxu0 0.0
    %1146 = vmatpush1.msra.mxu0 0.0
    %1147 = vmatprep.subr.mxu0 0.0
    %1148 = vmatpush1.msra.mxu0 0.0
    %1149 = vmatprep.subr.mxu0 0.0
    %1150 = vmatpush1.msra.mxu0 0.0
    %1151 = vmatprep.subr.mxu0 0.0
    %1152 = vmatpush1.msra.mxu0 0.0
    %1153 = vmatprep.subr.mxu0 0.0
    %1154 = vmatpush1.msra.mxu0 0.0
    %1155 = vmatprep.subr.mxu0 0.0
    %1156 = vmatpush1.msra.mxu0 0.0
    %1157 = vmatprep.mubr.f32.mxu0 0.0
    %1158 = vmatmul.mubr.f32.gmra.mrb[0].mxu0 %v1091
    %v1159 = vpop.f32.mrb[0].mxu0
    %v1160 = vadd.f32 0.0, %v1159
    %v1161 = vpop.f32.mrb[0].mxu0
    %1162 = vdwg.mxu0
    %1163 = vrot.lane.b32.xlu0 %v170, 104
    %v1164 = vpop.permute.xlu0 %1163
    %1165 = vrot.lane.b32.xlu0 %v156, 72
    %v1166 = vpop.permute.xlu0 %1165
    %v1167 = vsel %vm175, %v1164, 0
    %v1169 = vsel %vm175, %v1166, 0
    %1171 = vmatprep.subr.mxu0 0.0
    %1172 = vmatpush1.xpose.msra.mxu0 %v1169
    %1173 = vmatprep.subr.mxu0 0.0
    %1174 = vmatpush1.xpose.msra.mxu0 0.0
    %1175 = vmatprep.subr.mxu0 0.0
    %1176 = vmatpush1.xpose.msra.mxu0 0.0
    %1177 = vmatprep.subr.mxu0 0.0
    %1178 = vmatpush1.xpose.msra.mxu0 0.0
    %1179 = vmatprep.subr.mxu0 0.0
    %1180 = vmatpush1.xpose.msra.mxu0 0.0
    %1181 = vmatprep.subr.mxu0 0.0
    %1182 = vmatpush1.xpose.msra.mxu0 0.0
    %1183 = vmatprep.subr.mxu0 0.0
    %1184 = vmatpush1.xpose.msra.mxu0 0.0
    %1185 = vmatprep.subr.mxu0 0.0
    %1186 = vmatpush1.xpose.msra.mxu0 0.0
    %1187 = vmatprep.subr.mxu0 0.0
    %1188 = vmatpush1.xpose.msra.mxu0 0.0
    %1189 = vmatprep.subr.mxu0 0.0
    %1190 = vmatpush1.xpose.msra.mxu0 0.0
    %1191 = vmatprep.subr.mxu0 0.0
    %1192 = vmatpush1.xpose.msra.mxu0 0.0
    %1193 = vmatprep.subr.mxu0 0.0
    %1194 = vmatpush1.xpose.msra.mxu0 0.0
    %1195 = vmatprep.subr.mxu0 0.0
    %1196 = vmatpush1.xpose.msra.mxu0 0.0
    %1197 = vmatprep.subr.mxu0 0.0
    %1198 = vmatpush1.xpose.msra.mxu0 0.0
    %1199 = vmatprep.subr.mxu0 0.0
    %1200 = vmatpush1.xpose.msra.mxu0 0.0
    %1201 = vmatprep.subr.mxu0 0.0
    %1202 = vmatpush1.xpose.msra.mxu0 0.0
    %1203 = vmatprep.subr.mxu0 0.0
    %1204 = vmatpush1.xpose.msra.mxu0 0.0
    %1205 = vmatprep.subr.mxu0 0.0
    %1206 = vmatpush1.xpose.msra.mxu0 0.0
    %1207 = vmatprep.subr.mxu0 0.0
    %1208 = vmatpush1.xpose.msra.mxu0 0.0
    %1209 = vmatprep.subr.mxu0 0.0
    %1210 = vmatpush1.xpose.msra.mxu0 0.0
    %1211 = vmatprep.subr.mxu0 0.0
    %1212 = vmatpush1.xpose.msra.mxu0 0.0
    %1213 = vmatprep.subr.mxu0 0.0
    %1214 = vmatpush1.xpose.msra.mxu0 0.0
    %1215 = vmatprep.subr.mxu0 0.0
    %1216 = vmatpush1.xpose.msra.mxu0 0.0
    %1217 = vmatprep.subr.mxu0 0.0
    %1218 = vmatpush1.xpose.msra.mxu0 0.0
    %1219 = vmatprep.subr.mxu0 0.0
    %1220 = vmatpush1.xpose.msra.mxu0 0.0
    %1221 = vmatprep.subr.mxu0 0.0
    %1222 = vmatpush1.xpose.msra.mxu0 0.0
    %1223 = vmatprep.subr.mxu0 0.0
    %1224 = vmatpush1.xpose.msra.mxu0 0.0
    %1225 = vmatprep.subr.mxu0 0.0
    %1226 = vmatpush1.xpose.msra.mxu0 0.0
    %1227 = vmatprep.subr.mxu0 0.0
    %1228 = vmatpush1.xpose.msra.mxu0 0.0
    %1229 = vmatprep.subr.mxu0 0.0
    %1230 = vmatpush1.xpose.msra.mxu0 0.0
    %1231 = vmatprep.subr.mxu0 0.0
    %1232 = vmatpush1.xpose.msra.mxu0 0.0
    %1233 = vmatprep.subr.mxu0 0.0
    %1234 = vmatpush1.xpose.msra.mxu0 0.0
    %1235 = vmatprep.mubr.f32.mxu0 0.0
    %1236 = vmatmul.mubr.f32.gmra.mrb[0].mxu0 %v1167
    %v1237 = vpop.f32.mrb[0].mxu0
    %v1238 = vadd.f32 %v169, %v1237
    %v1239 = vpop.f32.mrb[0].mxu0
    %1240 = vdwg.mxu0
    %1241 = vrot.lane.b32.xlu0 %v171, 104
    %v1242 = vpop.permute.xlu0 %1241
    %1243 = vrot.lane.b32.xlu0 %v161, 72
    %v1244 = vpop.permute.xlu0 %1243
    %v1245 = vsel %vm175, %v1242, 0
    %v1247 = vsel %vm175, %v1244, 0
    %1249 = vmatprep.subr.mxu0 0.0
    %1250 = vmatpush1.xpose.msra.mxu0 %v1247
    %1251 = vmatprep.subr.mxu0 0.0
    %1252 = vmatpush1.xpose.msra.mxu0 0.0
    %1253 = vmatprep.subr.mxu0 0.0
    %1254 = vmatpush1.xpose.msra.mxu0 0.0
    %1255 = vmatprep.subr.mxu0 0.0
    %1256 = vmatpush1.xpose.msra.mxu0 0.0
    %1257 = vmatprep.subr.mxu0 0.0
    %1258 = vmatpush1.xpose.msra.mxu0 0.0
    %1259 = vmatprep.subr.mxu0 0.0
    %1260 = vmatpush1.xpose.msra.mxu0 0.0
    %1261 = vmatprep.subr.mxu0 0.0
    %1262 = vmatpush1.xpose.msra.mxu0 0.0
    %1263 = vmatprep.subr.mxu0 0.0
    %1264 = vmatpush1.xpose.msra.mxu0 0.0
    %1265 = vmatprep.subr.mxu0 0.0
    %1266 = vmatpush1.xpose.msra.mxu0 0.0
    %1267 = vmatprep.subr.mxu0 0.0
    %1268 = vmatpush1.xpose.msra.mxu0 0.0
    %1269 = vmatprep.subr.mxu0 0.0
    %1270 = vmatpush1.xpose.msra.mxu0 0.0
    %1271 = vmatprep.subr.mxu0 0.0
    %1272 = vmatpush1.xpose.msra.mxu0 0.0
    %1273 = vmatprep.subr.mxu0 0.0
    %1274 = vmatpush1.xpose.msra.mxu0 0.0
    %1275 = vmatprep.subr.mxu0 0.0
    %1276 = vmatpush1.xpose.msra.mxu0 0.0
    %1277 = vmatprep.subr.mxu0 0.0
    %1278 = vmatpush1.xpose.msra.mxu0 0.0
    %1279 = vmatprep.subr.mxu0 0.0
    %1280 = vmatpush1.xpose.msra.mxu0 0.0
    %1281 = vmatprep.subr.mxu0 0.0
    %1282 = vmatpush1.xpose.msra.mxu0 0.0
    %1283 = vmatprep.subr.mxu0 0.0
    %1284 = vmatpush1.xpose.msra.mxu0 0.0
    %1285 = vmatprep.subr.mxu0 0.0
    %1286 = vmatpush1.xpose.msra.mxu0 0.0
    %1287 = vmatprep.subr.mxu0 0.0
    %1288 = vmatpush1.xpose.msra.mxu0 0.0
    %1289 = vmatprep.subr.mxu0 0.0
    %1290 = vmatpush1.xpose.msra.mxu0 0.0
    %1291 = vmatprep.subr.mxu0 0.0
    %1292 = vmatpush1.xpose.msra.mxu0 0.0
    %1293 = vmatprep.subr.mxu0 0.0
    %1294 = vmatpush1.xpose.msra.mxu0 0.0
    %1295 = vmatprep.subr.mxu0 0.0
    %1296 = vmatpush1.xpose.msra.mxu0 0.0
    %1297 = vmatprep.subr.mxu0 0.0
    %1298 = vmatpush1.xpose.msra.mxu0 0.0
    %1299 = vmatprep.subr.mxu0 0.0
    %1300 = vmatpush1.xpose.msra.mxu0 0.0
    %1301 = vmatprep.subr.mxu0 0.0
    %1302 = vmatpush1.xpose.msra.mxu0 0.0
    %1303 = vmatprep.subr.mxu0 0.0
    %1304 = vmatpush1.xpose.msra.mxu0 0.0
    %1305 = vmatprep.subr.mxu0 0.0
    %1306 = vmatpush1.xpose.msra.mxu0 0.0
    %1307 = vmatprep.subr.mxu0 0.0
    %1308 = vmatpush1.xpose.msra.mxu0 0.0
    %1309 = vmatprep.subr.mxu0 0.0
    %1310 = vmatpush1.xpose.msra.mxu0 0.0
    %1311 = vmatprep.subr.mxu0 0.0
    %1312 = vmatpush1.xpose.msra.mxu0 0.0
    %1313 = vmatprep.mubr.f32.mxu0 0.0
    %1314 = vmatmul.mubr.f32.gmra.mrb[0].mxu0 %v1245
    %v1315 = vpop.f32.mrb[0].mxu0
    %v1316 = vadd.f32 %v169, %v1315
    %v1317 = vpop.f32.mrb[0].mxu0
    %1318 = vdwg.mxu0
    %v1319 = vsel %vm175, %v1238, -inf
    %1320 = vmax.xlane.f32.xlu0 %v1319
    %v1321 = vpop.xlane.xlu0 %1320
    %v1322 = vsel %vm175, %v1316, -inf
    %1323 = vmax.xlane.f32.xlu0 %v1322
    %v1324 = vpop.xlane.xlu0 %1323
    %v1325 = vsub.f32 %v1238, %v1321
    %v1326 = vsub.f32 %v1316, %v1324
    %v1327 = vmul.f32 %v1325, 1.442695
    %v1328 = vpow.pop %v1327
    %v1329 = vmul.f32 %v1326, 1.442695
    %v1330 = vpow.pop %v1329
    %v1331 = vsel %vm175, %v1328, 0.0
    %1332 = vadd.xlane.f32.xlu0 %v1331
    %v1333 = vpop.xlane.xlu0 %1332
    %v1334 = vsel %vm175, %v1330, 0.0
    %1335 = vadd.xlane.f32.xlu0 %v1334
    %v1336 = vpop.xlane.xlu0 %1335
    %v1337 = vrcp.pop %v1333
    %v1338 = vrcp.pop %v1336
    %v1339 = vmul.f32 %v1328, %v1337
    %v1340 = vmul.f32 %v1330, %v1338
    %1341 = vrot.lane.b32.xlu0 %v156, 40
    %v1342 = vpop.permute.xlu0 %1341
    %v1345 = vsel %vm175, %v1339, 0
    %1347 = vmatprep.subr.mxu0 0.0
    %1348 = vmatpush1.msra.mxu0 %v1342
    %1349 = vmatprep.subr.mxu0 0.0
    %1350 = vmatpush1.msra.mxu0 0.0
    %1351 = vmatprep.subr.mxu0 0.0
    %1352 = vmatpush1.msra.mxu0 0.0
    %1353 = vmatprep.subr.mxu0 0.0
    %1354 = vmatpush1.msra.mxu0 0.0
    %1355 = vmatprep.subr.mxu0 0.0
    %1356 = vmatpush1.msra.mxu0 0.0
    %1357 = vmatprep.subr.mxu0 0.0
    %1358 = vmatpush1.msra.mxu0 0.0
    %1359 = vmatprep.subr.mxu0 0.0
    %1360 = vmatpush1.msra.mxu0 0.0
    %1361 = vmatprep.subr.mxu0 0.0
    %1362 = vmatpush1.msra.mxu0 0.0
    %1363 = vmatprep.subr.mxu0 0.0
    %1364 = vmatpush1.msra.mxu0 0.0
    %1365 = vmatprep.subr.mxu0 0.0
    %1366 = vmatpush1.msra.mxu0 0.0
    %1367 = vmatprep.subr.mxu0 0.0
    %1368 = vmatpush1.msra.mxu0 0.0
    %1369 = vmatprep.subr.mxu0 0.0
    %1370 = vmatpush1.msra.mxu0 0.0
    %1371 = vmatprep.subr.mxu0 0.0
    %1372 = vmatpush1.msra.mxu0 0.0
    %1373 = vmatprep.subr.mxu0 0.0
    %1374 = vmatpush1.msra.mxu0 0.0
    %1375 = vmatprep.subr.mxu0 0.0
    %1376 = vmatpush1.msra.mxu0 0.0
    %1377 = vmatprep.subr.mxu0 0.0
    %1378 = vmatpush1.msra.mxu0 0.0
    %1379 = vmatprep.subr.mxu0 0.0
    %1380 = vmatpush1.msra.mxu0 0.0
    %1381 = vmatprep.subr.mxu0 0.0
    %1382 = vmatpush1.msra.mxu0 0.0
    %1383 = vmatprep.subr.mxu0 0.0
    %1384 = vmatpush1.msra.mxu0 0.0
    %1385 = vmatprep.subr.mxu0 0.0
    %1386 = vmatpush1.msra.mxu0 0.0
    %1387 = vmatprep.subr.mxu0 0.0
    %1388 = vmatpush1.msra.mxu0 0.0
    %1389 = vmatprep.subr.mxu0 0.0
    %1390 = vmatpush1.msra.mxu0 0.0
    %1391 = vmatprep.subr.mxu0 0.0
    %1392 = vmatpush1.msra.mxu0 0.0
    %1393 = vmatprep.subr.mxu0 0.0
    %1394 = vmatpush1.msra.mxu0 0.0
    %1395 = vmatprep.subr.mxu0 0.0
    %1396 = vmatpush1.msra.mxu0 0.0
    %1397 = vmatprep.subr.mxu0 0.0
    %1398 = vmatpush1.msra.mxu0 0.0
    %1399 = vmatprep.subr.mxu0 0.0
    %1400 = vmatpush1.msra.mxu0 0.0
    %1401 = vmatprep.subr.mxu0 0.0
    %1402 = vmatpush1.msra.mxu0 0.0
    %1403 = vmatprep.subr.mxu0 0.0
    %1404 = vmatpush1.msra.mxu0 0.0
    %1405 = vmatprep.subr.mxu0 0.0
    %1406 = vmatpush1.msra.mxu0 0.0
    %1407 = vmatprep.subr.mxu0 0.0
    %1408 = vmatpush1.msra.mxu0 0.0
    %1409 = vmatprep.subr.mxu0 0.0
    %1410 = vmatpush1.msra.mxu0 0.0
    %1411 = vmatprep.mubr.f32.mxu0 0.0
    %1412 = vmatmul.mubr.f32.gmra.mrb[0].mxu0 %v1345
    %v1413 = vpop.f32.mrb[0].mxu0
    %v1414 = vadd.f32 0.0, %v1413
    %v1415 = vpop.f32.mrb[0].mxu0
    %1416 = vdwg.mxu0
    %1417 = vrot.lane.b32.xlu0 %v161, 40
    %v1418 = vpop.permute.xlu0 %1417
    %v1421 = vsel %vm175, %v1340, 0
    %1423 = vmatprep.subr.mxu0 0.0
    %1424 = vmatpush1.msra.mxu0 %v1418
    %1425 = vmatprep.subr.mxu0 0.0
    %1426 = vmatpush1.msra.mxu0 0.0
    %1427 = vmatprep.subr.mxu0 0.0
    %1428 = vmatpush1.msra.mxu0 0.0
    %1429 = vmatprep.subr.mxu0 0.0
    %1430 = vmatpush1.msra.mxu0 0.0
    %1431 = vmatprep.subr.mxu0 0.0
    %1432 = vmatpush1.msra.mxu0 0.0
    %1433 = vmatprep.subr.mxu0 0.0
    %1434 = vmatpush1.msra.mxu0 0.0
    %1435 = vmatprep.subr.mxu0 0.0
    %1436 = vmatpush1.msra.mxu0 0.0
    %1437 = vmatprep.subr.mxu0 0.0
    %1438 = vmatpush1.msra.mxu0 0.0
    %1439 = vmatprep.subr.mxu0 0.0
    %1440 = vmatpush1.msra.mxu0 0.0
    %1441 = vmatprep.subr.mxu0 0.0
    %1442 = vmatpush1.msra.mxu0 0.0
    %1443 = vmatprep.subr.mxu0 0.0
    %1444 = vmatpush1.msra.mxu0 0.0
    %1445 = vmatprep.subr.mxu0 0.0
    %1446 = vmatpush1.msra.mxu0 0.0
    %1447 = vmatprep.subr.mxu0 0.0
    %1448 = vmatpush1.msra.mxu0 0.0
    %1449 = vmatprep.subr.mxu0 0.0
    %1450 = vmatpush1.msra.mxu0 0.0
    %1451 = vmatprep.subr.mxu0 0.0
    %1452 = vmatpush1.msra.mxu0 0.0
    %1453 = vmatprep.subr.mxu0 0.0
    %1454 = vmatpush1.msra.mxu0 0.0
    %1455 = vmatprep.subr.mxu0 0.0
    %1456 = vmatpush1.msra.mxu0 0.0
    %1457 = vmatprep.subr.mxu0 0.0
    %1458 = vmatpush1.msra.mxu0 0.0
    %1459 = vmatprep.subr.mxu0 0.0
    %1460 = vmatpush1.msra.mxu0 0.0
    %1461 = vmatprep.subr.mxu0 0.0
    %1462 = vmatpush1.msra.mxu0 0.0
    %1463 = vmatprep.subr.mxu0 0.0
    %1464 = vmatpush1.msra.mxu0 0.0
    %1465 = vmatprep.subr.mxu0 0.0
    %1466 = vmatpush1.msra.mxu0 0.0
    %1467 = vmatprep.subr.mxu0 0.0
    %1468 = vmatpush1.msra.mxu0 0.0
    %1469 = vmatprep.subr.mxu0 0.0
    %1470 = vmatpush1.msra.mxu0 0.0
    %1471 = vmatprep.subr.mxu0 0.0
    %1472 = vmatpush1.msra.mxu0 0.0
    %1473 = vmatprep.subr.mxu0 0.0
    %1474 = vmatpush1.msra.mxu0 0.0
    %1475 = vmatprep.subr.mxu0 0.0
    %1476 = vmatpush1.msra.mxu0 0.0
    %1477 = vmatprep.subr.mxu0 0.0
    %1478 = vmatpush1.msra.mxu0 0.0
    %1479 = vmatprep.subr.mxu0 0.0
    %1480 = vmatpush1.msra.mxu0 0.0
    %1481 = vmatprep.subr.mxu0 0.0
    %1482 = vmatpush1.msra.mxu0 0.0
    %1483 = vmatprep.subr.mxu0 0.0
    %1484 = vmatpush1.msra.mxu0 0.0
    %1485 = vmatprep.subr.mxu0 0.0
    %1486 = vmatpush1.msra.mxu0 0.0
    %1487 = vmatprep.mubr.f32.mxu0 0.0
    %1488 = vmatmul.mubr.f32.gmra.mrb[0].mxu0 %v1421
    %v1489 = vpop.f32.mrb[0].mxu0
    %v1490 = vadd.f32 0.0, %v1489
    %v1491 = vpop.f32.mrb[0].mxu0
    %1492 = vdwg.mxu0
    %1495 = vrot.lane.b32.xlu0 %v754, 8
    %v1496 = vpop.permute.xlu0 %1495
    %1497 = vrot.lane.b32.xlu0 %v830, 8
    %v1498 = vpop.permute.xlu0 %1497
    %1503 = vrot.lane.b32.xlu0 %v1084, 16
    %v1504 = vpop.permute.xlu0 %1503
    %1505 = vrot.lane.b32.xlu0 %v1160, 16
    %v1506 = vpop.permute.xlu0 %1505
    %1511 = vrot.lane.b32.xlu0 %v1414, 24
    %v1512 = vpop.permute.xlu0 %1511
    %1513 = vrot.lane.b32.xlu0 %v1490, 24
    %v1514 = vpop.permute.xlu0 %1513
    %v1517 = vsel %vm175, %v424, %v1496
    %v1518 = vsel %vm175, %v500, %v1498
    %vm1519 = vcmask 130048
    %v1520 = vsel %vm1519, %v1517, %v1504
    %v1521 = vsel %vm1519, %v1518, %v1506
    %vm1522 = vcmask 195584
    %v1523 = vsel %vm1522, %v1520, %v1512
    %v1524 = vsel %vm1522, %v1521, %v1514
    %v1525 = vld [vmem:[#allocation2] sm:$0xff]
    %v1526 = vld [vmem:[#allocation2 + $0x8] sm:$0xff]
    %v1527 = vld [vmem:[#allocation8] sm:$0xff]
    %v1528 = vld [vmem:[#allocation8 + $0x8] sm:$0xff]
    %v1529 = vld [vmem:[#allocation8 + $0x10] sm:$0xff]
    %v1530 = vld [vmem:[#allocation8 + $0x18] sm:$0xff]
    %v1532 = vsel %vm82, %v1523, 0
    %v1535 = vsel %vm82, %v1524, 0
    %1537 = vmatprep.subr.mxu0 0.0
    %1538 = vmatpush1.msra.mxu0 %v1527
    %1539 = vmatprep.subr.mxu0 0.0
    %1540 = vmatpush1.msra.mxu0 %v1528
    %1541 = vmatprep.subr.mxu0 0.0
    %1542 = vmatpush1.msra.mxu0 %v1529
    %1543 = vmatprep.subr.mxu0 0.0
    %1544 = vmatpush1.msra.mxu0 %v1530
    %1545 = vmatprep.subr.mxu0 0.0
    %1546 = vmatpush1.msra.mxu0 0.0
    %1547 = vmatprep.subr.mxu0 0.0
    %1548 = vmatpush1.msra.mxu0 0.0
    %1549 = vmatprep.subr.mxu0 0.0
    %1550 = vmatpush1.msra.mxu0 0.0
    %1551 = vmatprep.subr.mxu0 0.0
    %1552 = vmatpush1.msra.mxu0 0.0
    %1553 = vmatprep.subr.mxu0 0.0
    %1554 = vmatpush1.msra.mxu0 0.0
    %1555 = vmatprep.subr.mxu0 0.0
    %1556 = vmatpush1.msra.mxu0 0.0
    %1557 = vmatprep.subr.mxu0 0.0
    %1558 = vmatpush1.msra.mxu0 0.0
    %1559 = vmatprep.subr.mxu0 0.0
    %1560 = vmatpush1.msra.mxu0 0.0
    %1561 = vmatprep.subr.mxu0 0.0
    %1562 = vmatpush1.msra.mxu0 0.0
    %1563 = vmatprep.subr.mxu0 0.0
    %1564 = vmatpush1.msra.mxu0 0.0
    %1565 = vmatprep.subr.mxu0 0.0
    %1566 = vmatpush1.msra.mxu0 0.0
    %1567 = vmatprep.subr.mxu0 0.0
    %1568 = vmatpush1.msra.mxu0 0.0
    %1569 = vmatprep.subr.mxu0 0.0
    %1570 = vmatpush1.msra.mxu0 0.0
    %1571 = vmatprep.subr.mxu0 0.0
    %1572 = vmatpush1.msra.mxu0 0.0
    %1573 = vmatprep.subr.mxu0 0.0
    %1574 = vmatpush1.msra.mxu0 0.0
    %1575 = vmatprep.subr.mxu0 0.0
    %1576 = vmatpush1.msra.mxu0 0.0
    %1577 = vmatprep.subr.mxu0 0.0
    %1578 = vmatpush1.msra.mxu0 0.0
    %1579 = vmatprep.subr.mxu0 0.0
    %1580 = vmatpush1.msra.mxu0 0.0
    %1581 = vmatprep.subr.mxu0 0.0
    %1582 = vmatpush1.msra.mxu0 0.0
    %1583 = vmatprep.subr.mxu0 0.0
    %1584 = vmatpush1.msra.mxu0 0.0
    %1585 = vmatprep.subr.mxu0 0.0
    %1586 = vmatpush1.msra.mxu0 0.0
    %1587 = vmatprep.subr.mxu0 0.0
    %1588 = vmatpush1.msra.mxu0 0.0
    %1589 = vmatprep.subr.mxu0 0.0
    %1590 = vmatpush1.msra.mxu0 0.0
    %1591 = vmatprep.subr.mxu0 0.0
    %1592 = vmatpush1.msra.mxu0 0.0
    %1593 = vmatprep.subr.mxu0 0.0
    %1594 = vmatpush1.msra.mxu0 0.0
    %1595 = vmatprep.subr.mxu0 0.0
    %1596 = vmatpush1.msra.mxu0 0.0
    %1597 = vmatprep.subr.mxu0 0.0
    %1598 = vmatpush1.msra.mxu0 0.0
    %1599 = vmatprep.subr.mxu0 0.0
    %1600 = vmatpush1.msra.mxu0 0.0
    %1601 = vmatprep.mubr.f32.mxu0 0.0
    %1602 = vmatmul.mubr.f32.gmra.mrb[0].mxu0 %v1532
    %v1603 = vpop.f32.mrb[0].mxu0
    %v1604 = vadd.f32 0.0, %v1603
    %v1605 = vpop.f32.mrb[0].mxu0
    %1606 = vmatprep.mubr.f32.mxu0 0.0
    %1607 = vmatmul.mubr.f32.gmra.mrb[0].mxu0 %v1535
    %v1608 = vpop.f32.mrb[0].mxu0
    %v1609 = vadd.f32 0.0, %v1608
    %v1610 = vpop.f32.mrb[0].mxu0
    %1611 = vdwg.mxu0
    %v1612 = vadd.f32 %v1525, %v1604
    %v1613 = vadd.f32 %v1526, %v1609
    %1614 = vst.msk [vmem:[#allocation2] sm:$0xff] %vm82, %v1612
    %1615 = vst.msk [vmem:[#allocation2 + $0x8] sm:$0xff] %vm82, %v1613
    // Predicated region
    $region38: #{tpu_custom_call.1} parent=1 // pred_check
      %p1616 = pneg %p62
    $region39: #{tpu_custom_call.1} parent=1 // pred_check_branch
      %1618 = sbr.rel (%p1616) target = $region41
    $region40: #{tpu_custom_call.1} parent=1 // pred_region
      %v1619 = vld [vmem:[#allocation2] sm:$0xff]
      %v1620 = vld [vmem:[#allocation2 + $0x8] sm:$0xff]
      %v1621 = vld [vmem:[%s4] sm:$0x1]
      %v1623 = vlaneseq
      %v1624 = vshrl.u32 %v1623, 7
      %v1625 = vsub.s32 0, %v1624
      %v1626 = vrot.slane %v1621, %v1625
      %v1628 = vadd.f32 %v1619, %v1626
      %v1629 = vadd.f32 %v1620, %v1626
      %1630 = vst.msk [vmem:[#allocation9] sm:$0xff] %vm82, %v1628
      %1631 = vst.msk [vmem:[#allocation9 + $0x8] sm:$0xff] %vm82, %v1629
    $region41: #{tpu_custom_call.1} parent=1 // pred_fallthru
      _
    // Predicated region
    $region42: #{tpu_custom_call.1} parent=1 // pred_check
      _
    $region43: #{tpu_custom_call.1} parent=1 // pred_check_branch
      %1633 = sbr.rel (0) target = $region45
    $region44: #{tpu_custom_call.1} parent=1 // pred_region
      %s1635 = ssub.s32 256, 256
      %1636 = vsyncadd [#allocation5], %s1635
      %s1637 = sshll.u32 [#allocation9], 4
      %s1638 = int_to_ptr.vmem [resolvable:$true] %s1637
      %1643 = dma.vmem_to_hbm [thread:$0]  %s1638, 256, %s5, [#allocation5], 128, 128, 8
    $region45: #{tpu_custom_call.1} parent=1 // pred_fallthru
      _
    // Predicated region
    $region46: #{tpu_custom_call.1} parent=1 // pred_check
      _
    $region47: #{tpu_custom_call.1} parent=1 // pred_check_branch
      %1645 = sbr.rel (0) target = $region49
    $region48: #{tpu_custom_call.1} parent=1 // pred_region
      %1646 = dma.done [#allocation5], 256
    $region49: #{tpu_custom_call.1} parent=1 // pred_fallthru
      _
    %1647 = vsyncpa [#allocation4], 1
    %1648 = vsyncpa [#allocation7], 1
    %1649 = vsyncpa [#allocation5], 1

</llo_original>
